<compile_context>
chip_gen: v5e
topology: v5e:2x2
jax: 0.10.0
libtpu: 0.0.40
codegen_flags: <defaults>
</compile_context>

<pallas_src>
import math
import functools

import jax
import jax.numpy as jnp
from jax.experimental import pallas as pl
from jax.experimental.pallas import tpu as pltpu

PAD = 128              # lane-dense padded feature width for every layer
FUSED_MAX_NPAD = 2048  # largest padded N for the single fused-call path


# --------------------------------------------------------------------------
# Small helpers
# --------------------------------------------------------------------------
def _round_up(n, m):
    return ((n + m - 1) // m) * m


def _lcm(a, b):
    return a * b // math.gcd(a, b)


def _leaky(v):
    return jnp.where(v > 0, v, 0.01 * v)


@functools.lru_cache(maxsize=1)
def _vmem_limit_bytes():
    # ~96 MiB on v5e/v6e (128 MiB physical), ~48 MiB on v7x (64 MiB physical).
    cap = 128 * 1024 * 1024
    try:
        info_cap = int(pltpu.get_tpu_info().vmem_capacity_bytes)
        if info_cap > 0:
            cap = info_cap
    except Exception:
        pass
    return min(cap * 3 // 4, 100 * 1024 * 1024)


def _vmem_spec():
    return pl.BlockSpec(memory_space=pltpu.MemorySpace.VMEM)


# --------------------------------------------------------------------------
# Fused kernel (small graphs): 3x (GCNConv + folded BN + LeakyReLU) + FNN head
# --------------------------------------------------------------------------
def _make_fused_kernel(with_embeddings):
    def kernel(x_ref, a_ref, ws_ref, bs_ref, *refs):
        if with_embeddings:
            y_ref, out_ref = refs
        else:
            (out_ref,) = refs

        a = a_ref[...]            # (Npad, Npad) bf16 normalized adjacency
        h = x_ref[...]            # (Npad, PAD) bf16 padded node features
        g = None
        for l in range(3):        # GCNConv (+ folded BN) + LeakyReLU
            g = jnp.dot(a, h, preferred_element_type=jnp.float32)
            g = jnp.dot(g.astype(jnp.bfloat16), ws_ref[l],
                        preferred_element_type=jnp.float32) + bs_ref[l]
            g = _leaky(g)
            h = g.astype(jnp.bfloat16)
        if with_embeddings:
            y_ref[...] = g        # f32 128-dim node embeddings (lane-dense)
        for j in range(3):        # Linear head; dropout is identity (eval)
            g = jnp.dot(g.astype(jnp.bfloat16), ws_ref[3 + j],
                        preferred_element_type=jnp.float32) + bs_ref[3 + j]
            if j < 2:
                g = _leaky(g)
        out_ref[...] = g          # padded to 128 lanes; column 0 is real

    return kernel


def gcn_forward_fused(x, a_norm, params, *, with_embeddings=True):
    n, f = x.shape
    npad = _round_up(n, 128)
    x_pad = jnp.zeros((npad, PAD), jnp.bfloat16).at[:n, :f].set(
        x.astype(jnp.bfloat16))
    a_pad = jnp.zeros((npad, npad), jnp.bfloat16).at[:n, :n].set(
        a_norm.astype(jnp.bfloat16))

    if with_embeddings:
        out_shape = (jax.ShapeDtypeStruct((npad, PAD), jnp.float32),
                     jax.ShapeDtypeStruct((npad, PAD), jnp.float32))
        out_specs = (_vmem_spec(), _vmem_spec())
    else:
        out_shape = jax.ShapeDtypeStruct((npad, PAD), jnp.float32)
        out_specs = _vmem_spec()

    res = pl.pallas_call(
        _make_fused_kernel(with_embeddings),
        out_shape=out_shape,
        in_specs=[_vmem_spec()] * 4,
        out_specs=out_specs,
        compiler_params=pltpu.CompilerParams(
            vmem_limit_bytes=_vmem_limit_bytes()),
    )(x_pad, a_pad, params["ws"], params["bs"])

    if with_embeddings:
        y_pad, out_pad = res
        return y_pad[:n], out_pad[:n, :1]
    return res[:n, :1]


# --------------------------------------------------------------------------
# Tiled kernels (large graphs): gridded A, K-reduction accumulator
# --------------------------------------------------------------------------
def _gcn_layer_kernel(h_ref, a_ref, w_ref, b_ref, o_ref, acc_ref):
    k = pl.program_id(1)
    tk = a_ref.shape[1]

    @pl.when(k == 0)
    def _():
        acc_ref[...] = jnp.zeros_like(acc_ref)

    # Accumulate A[i,k] @ H[k] in f32 (bf16 operands on the MXU).
    row0 = pl.multiple_of(k * tk, 128)
    h_blk = h_ref[pl.ds(row0, tk), :]
    acc_ref[...] += jnp.dot(a_ref[...], h_blk,
                            preferred_element_type=jnp.float32)

    @pl.when(k == pl.num_programs(1) - 1)
    def _():
        g = jnp.dot(acc_ref[...].astype(jnp.bfloat16), w_ref[...],
                    preferred_element_type=jnp.float32) + b_ref[...]
        o_ref[...] = _leaky(g).astype(o_ref.dtype)


def _make_last_layer_kernel(with_embeddings):
    def kernel(h_ref, a_ref, w_ref, b_ref, wf_ref, bf_ref, *refs):
        if with_embeddings:
            y_ref, out_ref, acc_ref = refs
        else:
            out_ref, acc_ref = refs
            y_ref = None

        k = pl.program_id(1)
        tk = a_ref.shape[1]

        @pl.when(k == 0)
        def _():
            acc_ref[...] = jnp.zeros_like(acc_ref)

        row0 = pl.multiple_of(k * tk, 128)
        h_blk = h_ref[pl.ds(row0, tk), :]
        acc_ref[...] += jnp.dot(a_ref[...], h_blk,
                                preferred_element_type=jnp.float32)

        @pl.when(k == pl.num_programs(1) - 1)
        def _():
            g = _leaky(jnp.dot(acc_ref[...].astype(jnp.bfloat16), w_ref[...],
                               preferred_element_type=jnp.float32) + b_ref[...])
            if with_embeddings:
                y_ref[...] = g
            h = g
            for j in range(3):       # fused FNN head
                h = jnp.dot(h.astype(jnp.bfloat16), wf_ref[j],
                            preferred_element_type=jnp.float32) + bf_ref[j]
                if j < 2:
                    h = _leaky(h)
            out_ref[...] = h

    return kernel


def gcn_forward_tiled(x, a_norm, params, *, tm=256, tk=512, with_embeddings=True):
    n, f = x.shape
    npad = _round_up(n, _lcm(tm, tk))
    x_pad = jnp.zeros((npad, PAD), jnp.bfloat16).at[:n, :f].set(
        x.astype(jnp.bfloat16))
    a_pad = jnp.zeros((npad, npad), jnp.bfloat16).at[:n, :n].set(
        a_norm.astype(jnp.bfloat16))
    ws, bs = params["ws"], params["bs"]

    grid = (npad // tm, npad // tk)
    cparams = pltpu.CompilerParams(
        dimension_semantics=("parallel", "arbitrary"),  # row blocks across TCs
        vmem_limit_bytes=_vmem_limit_bytes())

    # H fully VMEM-resident (constant block index -> fetched once per call).
    h_spec = pl.BlockSpec((npad, PAD), lambda i, k: (0, 0))
    a_spec = pl.BlockSpec((tm, tk), lambda i, k: (i, k))
    w_spec = pl.BlockSpec((PAD, PAD), lambda i, k: (0, 0))
    b_spec = pl.BlockSpec((1, PAD), lambda i, k: (0, 0))
    o_spec = pl.BlockSpec((tm, PAD), lambda i, k: (i, 0))
    acc = pltpu.VMEM((tm, PAD), jnp.float32)

    def mid_layer(h_in, layer):
        return pl.pallas_call(
            _gcn_layer_kernel,
            out_shape=jax.ShapeDtypeStruct((npad, PAD), jnp.bfloat16),
            grid_spec=pltpu.PrefetchScalarGridSpec(
                num_scalar_prefetch=0, grid=grid,
                in_specs=[h_spec, a_spec, w_spec, b_spec],
                out_specs=o_spec,
                scratch_shapes=[acc]),
            compiler_params=cparams,
        )(h_in, a_pad, ws[layer], bs[layer])

    h = mid_layer(x_pad, 0)
    h = mid_layer(h, 1)

    wf_spec = pl.BlockSpec((3, PAD, PAD), lambda i, k: (0, 0, 0))
    bf_spec = pl.BlockSpec((3, 1, PAD), lambda i, k: (0, 0, 0))
    if with_embeddings:
        out_shape = (jax.ShapeDtypeStruct((npad, PAD), jnp.float32),
                     jax.ShapeDtypeStruct((npad, PAD), jnp.float32))
        out_specs = (o_spec, o_spec)
    else:
        out_shape = jax.ShapeDtypeStruct((npad, PAD), jnp.float32)
        out_specs = o_spec

    res = pl.pallas_call(
        _make_last_layer_kernel(with_embeddings),
        out_shape=out_shape,
        grid_spec=pltpu.PrefetchScalarGridSpec(
            num_scalar_prefetch=0, grid=grid,
            in_specs=[h_spec, a_spec, w_spec, b_spec, wf_spec, bf_spec],
            out_specs=out_specs,
            scratch_shapes=[acc]),
        compiler_params=cparams,
    )(h, a_pad, ws[2], bs[2], ws[3:], bs[3:])

    if with_embeddings:
        y_pad, out_pad = res
        return y_pad[:n], out_pad[:n, :1]
    return res[:n, :1]


def gcn_forward(x, a_norm, params, *, with_embeddings=True):
    if _round_up(x.shape[0], 128) <= FUSED_MAX_NPAD:
        return gcn_forward_fused(x, a_norm, params,
                                 with_embeddings=with_embeddings)
    return gcn_forward_tiled(x, a_norm, params,
                             with_embeddings=with_embeddings)


# --------------------------------------------------------------------------
# Parameter construction (mirrors GCN.__init__), BN-fold, lane-pad, packing
# --------------------------------------------------------------------------
def xavier_uniform(key, fan_in, fan_out):
    bound = (6.0 / (fan_in + fan_out)) ** 0.5
    return jax.random.uniform(key, (fan_in, fan_out), jnp.float32, -bound, bound)


def linear_bias(key, fan_in, fan_out):
    bound = 1.0 / (fan_in ** 0.5)
    return jax.random.uniform(key, (1, fan_out), jnp.float32, -bound, bound)


def _pad_w(w):
    ci, co = w.shape
    return jnp.zeros((PAD, PAD), jnp.float32).at[:ci, :co].set(w)


def _pad_b(b):
    co = b.shape[-1]
    return jnp.zeros((1, PAD), jnp.float32).at[:, :co].set(b.reshape(1, co))


def make_params(key, input_dim):
    kit = iter(jax.random.split(key, 9))        # 3 GCN W + 3 (FNN W, FNN b)
    dims_gcn = [(input_dim, 32), (32, 64), (64, 128)]
    dims_fnn = [(128, 64), (64, 32), (32, 1)]
    eps = 1e-5
    raw = []   # BN-folded, unpadded f32 (W, b) per layer (for the reference)

    # GCN layers: fold eval-mode BatchNorm (gamma=1, beta=0, mean=0, var=1).
    bn_scale = 1.0 / jnp.sqrt(1.0 + eps)
    for ci, co in dims_gcn:
        w = xavier_uniform(next(kit), ci, co) * bn_scale    # GCNConv.lin xavier
        b = jnp.zeros((1, co), jnp.float32)                 # GCNConv bias = 0
        raw.append((w, b))

    # FNN head layers (xavier weight, PyTorch-default uniform bias).
    for ci, co in dims_fnn:
        w = xavier_uniform(next(kit), ci, co)
        b = linear_bias(next(kit), ci, co)
        raw.append((w, b))

    ws = jnp.stack([_pad_w(w) for (w, _) in raw]).astype(jnp.bfloat16)  # (6,128,128)
    bs = jnp.stack([_pad_b(b) for (_, b) in raw])                       # (6,1,128) f32
    return {"ws": ws, "bs": bs, "raw": raw}


def build_normalized_adjacency(edge_index, num_nodes):
    """Dense D^-1/2 (A + 2I) D^-1/2  (GCNConv with improved=True).

    The source graph (polygon-touch adjacency) is undirected, so the edge
    list is symmetrized here.
    """
    src, dst = edge_index
    a = jnp.zeros((num_nodes, num_nodes), jnp.float32)
    a = a.at[src, dst].set(1.0)
    a = jnp.maximum(a, a.T)
    a_hat = a + 2.0 * jnp.eye(num_nodes, dtype=jnp.float32)
    deg = a_hat.sum(axis=1)
    dinv = jnp.where(deg > 0, deg ** -0.5, 0.0)
    return dinv[:, None] * a_hat * dinv[None, :]


# --------------------------------------------------------------------------
# Pure-JAX reference (eval mode).  bf16_inputs=True mirrors the kernel's
# matmul-operand casting for a tight numerical comparison.
# --------------------------------------------------------------------------
def gcn_forward_ref(x, a_norm, params, *, bf16_inputs=False):
    c = (lambda v: v.astype(jnp.bfloat16)) if bf16_inputs else (lambda v: v)
    raw = params["raw"]
    a = c(a_norm)
    h = c(x)
    g = None
    for (w, b) in raw[:3]:
        g = jnp.dot(a, h, preferred_element_type=jnp.float32)
        g = jnp.dot(c(g), c(w), preferred_element_type=jnp.float32) + b
        g = _leaky(g)
        h = c(g)
    y = g
    h = g
    for j, (w, b) in enumerate(raw[3:]):
        h = jnp.dot(c(h), c(w), preferred_element_type=jnp.float32) + b
        if j < 2:
            h = _leaky(h)
    return y, h


# --------------------------------------------------------------------------
# Self-test
# --------------------------------------------------------------------------
if __name__ == "__main__":
    key = jax.random.PRNGKey(0)
    k_feat, k_feat2, k_param = jax.random.split(key, 3)

    input_dim = 2  # node attrs: ['areas', 'pers']
    params = make_params(k_param, input_dim)

    # ---------------- small graph (N=16): fused single-call path ------------
    n_small = 16
    src = list(range(n_small)) + [0, 2, 4, 6]
    dst = [(i + 1) % n_small for i in range(n_small)] + [8, 10, 12, 14]
    edge_index = (jnp.array(src, dtype=jnp.int32), jnp.array(dst, dtype=jnp.int32))
    x = jax.random.normal(k_feat, (n_small, input_dim), jnp.float32)
    a_norm = build_normalized_adjacency(edge_index, n_small)

    y, out = gcn_forward(x, a_norm, params)                # -> fused path
    jax.block_until_ready((y, out))
    assert y.shape == (n_small, 128)
    assert out.shape == (n_small, 1)

    y_m, out_m = gcn_forward_ref(x, a_norm, params, bf16_inputs=True)
    assert jnp.allclose(y, y_m, rtol=1e-2, atol=1e-2)
    assert jnp.allclose(out, out_m, rtol=1e-2, atol=1e-2)
    y_f, out_f = gcn_forward_ref(x, a_norm, params, bf16_inputs=False)
    assert jnp.allclose(y, y_f, rtol=1.5e-1, atol=1.5e-1)
    assert jnp.allclose(out, out_f, rtol=1.5e-1, atol=1.5e-1)

    # Prediction-only variant (drops the (N,128) embedding writeback).
    out_only = gcn_forward_fused(x, a_norm, params, with_embeddings=False)
    jax.block_until_ready(out_only)
    assert out_only.shape == (n_small, 1)
    assert jnp.allclose(out_only, out, rtol=1e-5, atol=1e-5)

    # ------------- larger graph (N=300): tiled / gridded path ---------------
    n_big = 300
    src2 = list(range(n_big)) * 2
    dst2 = ([(i + 1) % n_big for i in range(n_big)]
            + [(i * 7 + 3) % n_big for i in range(n_big)])
    edge_index2 = (jnp.array(src2, dtype=jnp.int32),
                   jnp.array(dst2, dtype=jnp.int32))
    x2 = jax.random.normal(k_feat2, (n_big, input_dim), jnp.float32)
    a_norm2 = build_normalized_adjacency(edge_index2, n_big)

    # Small tiles here so the (row, k) grid genuinely has multiple blocks.
    y2, out2 = gcn_forward_tiled(x2, a_norm2, params, tm=128, tk=128)
    jax.block_until_ready((y2, out2))
    assert y2.shape == (n_big, 128)
    assert out2.shape == (n_big, 1)

    y2_m, out2_m = gcn_forward_ref(x2, a_norm2, params, bf16_inputs=True)
    assert jnp.allclose(y2, y2_m, rtol=1e-2, atol=1e-2)
    assert jnp.allclose(out2, out2_m, rtol=1e-2, atol=1e-2)

    print("KERNEL_OK")
</pallas_src>

<mosaic_0001>
module attributes {stable_mosaic.version = 11 : i64} {
  func.func @kernel(%arg0: memref<128x128xbf16, #tpu.memory_space<vmem>>, %arg1: memref<128x128xbf16, #tpu.memory_space<vmem>>, %arg2: memref<6x128x128xbf16, #tpu.memory_space<vmem>>, %arg3: memref<6x1x128xf32, #tpu.memory_space<vmem>>, %arg4: memref<128x128xf32, #tpu.memory_space<vmem>>, %arg5: memref<128x128xf32, #tpu.memory_space<vmem>>) attributes {dimension_semantics = [], scalar_prefetch = 0 : i64, scratch_operands = 0 : i64, tpu.core_type = #tpu.core_type<tc>} {
    %c0 = arith.constant 0 : index
    %c0_0 = arith.constant 0 : index
    %0 = vector.load %arg1[%c0, %c0_0] : memref<128x128xbf16, #tpu.memory_space<vmem>>, vector<128x128xbf16>
    %c0_1 = arith.constant 0 : index
    %c0_2 = arith.constant 0 : index
    %1 = vector.load %arg0[%c0_1, %c0_2] : memref<128x128xbf16, #tpu.memory_space<vmem>>, vector<128x128xbf16>
    %cst = arith.constant dense<0.000000e+00> : vector<128x128xf32>
    %2 = tpu.matmul %0, %1, %cst {dimension_numbers = #tpu.dot_dimension_numbers<[1], [0], [0], [1], [0, 0, 1, 1], [], []>} : vector<128x128xbf16>, vector<128x128xbf16>, vector<128x128xf32> -> vector<128x128xf32>
    %3 = arith.truncf %2 : vector<128x128xf32> to vector<128x128xbf16>
    %c0_3 = arith.constant 0 : index
    %c0_4 = arith.constant 0 : index
    %c0_5 = arith.constant 0 : index
    %4 = vector.load %arg2[%c0_3, %c0_4, %c0_5] : memref<6x128x128xbf16, #tpu.memory_space<vmem>>, vector<1x128x128xbf16>
    %5 = vector.shape_cast %4 : vector<1x128x128xbf16> to vector<128x128xbf16>
    %cst_6 = arith.constant dense<0.000000e+00> : vector<128x128xf32>
    %6 = tpu.matmul %3, %5, %cst_6 {dimension_numbers = #tpu.dot_dimension_numbers<[1], [0], [0], [1], [0, 0, 1, 1], [], []>} : vector<128x128xbf16>, vector<128x128xbf16>, vector<128x128xf32> -> vector<128x128xf32>
    %c0_7 = arith.constant 0 : index
    %c0_8 = arith.constant 0 : index
    %c0_9 = arith.constant 0 : index
    %7 = vector.load %arg3[%c0_7, %c0_8, %c0_9] : memref<6x1x128xf32, #tpu.memory_space<vmem>>, vector<1x1x128xf32>
    %8 = vector.shape_cast %7 : vector<1x1x128xf32> to vector<1x128xf32>
    %9 = vector.broadcast %8 : vector<1x128xf32> to vector<128x128xf32>
    %10 = arith.addf %6, %9 : vector<128x128xf32>
    %cst_10 = arith.constant 0.000000e+00 : f32
    %11 = vector.broadcast %cst_10 : f32 to vector<128x128xf32>
    %12 = arith.cmpf ogt, %10, %11 : vector<128x128xf32>
    %cst_11 = arith.constant 0.00999999977 : f32
    %13 = vector.broadcast %cst_11 : f32 to vector<128x128xf32>
    %14 = arith.mulf %13, %10 : vector<128x128xf32>
    %15 = arith.select %12, %10, %14 : vector<128x128xi1>, vector<128x128xf32>
    %16 = arith.truncf %15 : vector<128x128xf32> to vector<128x128xbf16>
    %cst_12 = arith.constant dense<0.000000e+00> : vector<128x128xf32>
    %17 = tpu.matmul %0, %16, %cst_12 {dimension_numbers = #tpu.dot_dimension_numbers<[1], [0], [0], [1], [0, 0, 1, 1], [], []>} : vector<128x128xbf16>, vector<128x128xbf16>, vector<128x128xf32> -> vector<128x128xf32>
    %18 = arith.truncf %17 : vector<128x128xf32> to vector<128x128xbf16>
    %c1 = arith.constant 1 : index
    %c0_13 = arith.constant 0 : index
    %c0_14 = arith.constant 0 : index
    %19 = vector.load %arg2[%c1, %c0_13, %c0_14] : memref<6x128x128xbf16, #tpu.memory_space<vmem>>, vector<1x128x128xbf16>
    %20 = vector.shape_cast %19 : vector<1x128x128xbf16> to vector<128x128xbf16>
    %cst_15 = arith.constant dense<0.000000e+00> : vector<128x128xf32>
    %21 = tpu.matmul %18, %20, %cst_15 {dimension_numbers = #tpu.dot_dimension_numbers<[1], [0], [0], [1], [0, 0, 1, 1], [], []>} : vector<128x128xbf16>, vector<128x128xbf16>, vector<128x128xf32> -> vector<128x128xf32>
    %c1_16 = arith.constant 1 : index
    %c0_17 = arith.constant 0 : index
    %c0_18 = arith.constant 0 : index
    %22 = vector.load %arg3[%c1_16, %c0_17, %c0_18] : memref<6x1x128xf32, #tpu.memory_space<vmem>>, vector<1x1x128xf32>
    %23 = vector.shape_cast %22 : vector<1x1x128xf32> to vector<1x128xf32>
    %24 = vector.broadcast %23 : vector<1x128xf32> to vector<128x128xf32>
    %25 = arith.addf %21, %24 : vector<128x128xf32>
    %cst_19 = arith.constant 0.000000e+00 : f32
    %26 = vector.broadcast %cst_19 : f32 to vector<128x128xf32>
    %27 = arith.cmpf ogt, %25, %26 : vector<128x128xf32>
    %cst_20 = arith.constant 0.00999999977 : f32
    %28 = vector.broadcast %cst_20 : f32 to vector<128x128xf32>
    %29 = arith.mulf %28, %25 : vector<128x128xf32>
    %30 = arith.select %27, %25, %29 : vector<128x128xi1>, vector<128x128xf32>
    %31 = arith.truncf %30 : vector<128x128xf32> to vector<128x128xbf16>
    %cst_21 = arith.constant dense<0.000000e+00> : vector<128x128xf32>
    %32 = tpu.matmul %0, %31, %cst_21 {dimension_numbers = #tpu.dot_dimension_numbers<[1], [0], [0], [1], [0, 0, 1, 1], [], []>} : vector<128x128xbf16>, vector<128x128xbf16>, vector<128x128xf32> -> vector<128x128xf32>
    %33 = arith.truncf %32 : vector<128x128xf32> to vector<128x128xbf16>
    %c2 = arith.constant 2 : index
    %c0_22 = arith.constant 0 : index
    %c0_23 = arith.constant 0 : index
    %34 = vector.load %arg2[%c2, %c0_22, %c0_23] : memref<6x128x128xbf16, #tpu.memory_space<vmem>>, vector<1x128x128xbf16>
    %35 = vector.shape_cast %34 : vector<1x128x128xbf16> to vector<128x128xbf16>
    %cst_24 = arith.constant dense<0.000000e+00> : vector<128x128xf32>
    %36 = tpu.matmul %33, %35, %cst_24 {dimension_numbers = #tpu.dot_dimension_numbers<[1], [0], [0], [1], [0, 0, 1, 1], [], []>} : vector<128x128xbf16>, vector<128x128xbf16>, vector<128x128xf32> -> vector<128x128xf32>
    %c2_25 = arith.constant 2 : index
    %c0_26 = arith.constant 0 : index
    %c0_27 = arith.constant 0 : index
    %37 = vector.load %arg3[%c2_25, %c0_26, %c0_27] : memref<6x1x128xf32, #tpu.memory_space<vmem>>, vector<1x1x128xf32>
    %38 = vector.shape_cast %37 : vector<1x1x128xf32> to vector<1x128xf32>
    %39 = vector.broadcast %38 : vector<1x128xf32> to vector<128x128xf32>
    %40 = arith.addf %36, %39 : vector<128x128xf32>
    %cst_28 = arith.constant 0.000000e+00 : f32
    %41 = vector.broadcast %cst_28 : f32 to vector<128x128xf32>
    %42 = arith.cmpf ogt, %40, %41 : vector<128x128xf32>
    %cst_29 = arith.constant 0.00999999977 : f32
    %43 = vector.broadcast %cst_29 : f32 to vector<128x128xf32>
    %44 = arith.mulf %43, %40 : vector<128x128xf32>
    %45 = arith.select %42, %40, %44 : vector<128x128xi1>, vector<128x128xf32>
    %c0_30 = arith.constant 0 : index
    %c0_31 = arith.constant 0 : index
    %46 = vector.load %arg4[%c0_30, %c0_31] : memref<128x128xf32, #tpu.memory_space<vmem>>, vector<128x128xf32>
    tpu.vector_store %arg4[%c0_30, %c0_31], %45 {strides = array<i32>} : memref<128x128xf32, #tpu.memory_space<vmem>>, vector<128x128xf32>,
    %47 = arith.truncf %45 : vector<128x128xf32> to vector<128x128xbf16>
    %c3 = arith.constant 3 : index
    %c0_32 = arith.constant 0 : index
    %c0_33 = arith.constant 0 : index
    %48 = vector.load %arg2[%c3, %c0_32, %c0_33] : memref<6x128x128xbf16, #tpu.memory_space<vmem>>, vector<1x128x128xbf16>
    %49 = vector.shape_cast %48 : vector<1x128x128xbf16> to vector<128x128xbf16>
    %cst_34 = arith.constant dense<0.000000e+00> : vector<128x128xf32>
    %50 = tpu.matmul %47, %49, %cst_34 {dimension_numbers = #tpu.dot_dimension_numbers<[1], [0], [0], [1], [0, 0, 1, 1], [], []>} : vector<128x128xbf16>, vector<128x128xbf16>, vector<128x128xf32> -> vector<128x128xf32>
    %c3_35 = arith.constant 3 : index
    %c0_36 = arith.constant 0 : index
    %c0_37 = arith.constant 0 : index
    %51 = vector.load %arg3[%c3_35, %c0_36, %c0_37] : memref<6x1x128xf32, #tpu.memory_space<vmem>>, vector<1x1x128xf32>
    %52 = vector.shape_cast %51 : vector<1x1x128xf32> to vector<1x128xf32>
    %53 = vector.broadcast %52 : vector<1x128xf32> to vector<128x128xf32>
    %54 = arith.addf %50, %53 : vector<128x128xf32>
    %cst_38 = arith.constant 0.000000e+00 : f32
    %55 = vector.broadcast %cst_38 : f32 to vector<128x128xf32>
    %56 = arith.cmpf ogt, %54, %55 : vector<128x128xf32>
    %cst_39 = arith.constant 0.00999999977 : f32
    %57 = vector.broadcast %cst_39 : f32 to vector<128x128xf32>
    %58 = arith.mulf %57, %54 : vector<128x128xf32>
    %59 = arith.select %56, %54, %58 : vector<128x128xi1>, vector<128x128xf32>
    %60 = arith.truncf %59 : vector<128x128xf32> to vector<128x128xbf16>
    %c4 = arith.constant 4 : index
    %c0_40 = arith.constant 0 : index
    %c0_41 = arith.constant 0 : index
    %61 = vector.load %arg2[%c4, %c0_40, %c0_41] : memref<6x128x128xbf16, #tpu.memory_space<vmem>>, vector<1x128x128xbf16>
    %62 = vector.shape_cast %61 : vector<1x128x128xbf16> to vector<128x128xbf16>
    %cst_42 = arith.constant dense<0.000000e+00> : vector<128x128xf32>
    %63 = tpu.matmul %60, %62, %cst_42 {dimension_numbers = #tpu.dot_dimension_numbers<[1], [0], [0], [1], [0, 0, 1, 1], [], []>} : vector<128x128xbf16>, vector<128x128xbf16>, vector<128x128xf32> -> vector<128x128xf32>
    %c4_43 = arith.constant 4 : index
    %c0_44 = arith.constant 0 : index
    %c0_45 = arith.constant 0 : index
    %64 = vector.load %arg3[%c4_43, %c0_44, %c0_45] : memref<6x1x128xf32, #tpu.memory_space<vmem>>, vector<1x1x128xf32>
    %65 = vector.shape_cast %64 : vector<1x1x128xf32> to vector<1x128xf32>
    %66 = vector.broadcast %65 : vector<1x128xf32> to vector<128x128xf32>
    %67 = arith.addf %63, %66 : vector<128x128xf32>
    %cst_46 = arith.constant 0.000000e+00 : f32
    %68 = vector.broadcast %cst_46 : f32 to vector<128x128xf32>
    %69 = arith.cmpf ogt, %67, %68 : vector<128x128xf32>
    %cst_47 = arith.constant 0.00999999977 : f32
    %70 = vector.broadcast %cst_47 : f32 to vector<128x128xf32>
    %71 = arith.mulf %70, %67 : vector<128x128xf32>
    %72 = arith.select %69, %67, %71 : vector<128x128xi1>, vector<128x128xf32>
    %73 = arith.truncf %72 : vector<128x128xf32> to vector<128x128xbf16>
    %c5 = arith.constant 5 : index
    %c0_48 = arith.constant 0 : index
    %c0_49 = arith.constant 0 : index
    %74 = vector.load %arg2[%c5, %c0_48, %c0_49] : memref<6x128x128xbf16, #tpu.memory_space<vmem>>, vector<1x128x128xbf16>
    %75 = vector.shape_cast %74 : vector<1x128x128xbf16> to vector<128x128xbf16>
    %cst_50 = arith.constant dense<0.000000e+00> : vector<128x128xf32>
    %76 = tpu.matmul %73, %75, %cst_50 {dimension_numbers = #tpu.dot_dimension_numbers<[1], [0], [0], [1], [0, 0, 1, 1], [], []>} : vector<128x128xbf16>, vector<128x128xbf16>, vector<128x128xf32> -> vector<128x128xf32>
    %c5_51 = arith.constant 5 : index
    %c0_52 = arith.constant 0 : index
    %c0_53 = arith.constant 0 : index
    %77 = vector.load %arg3[%c5_51, %c0_52, %c0_53] : memref<6x1x128xf32, #tpu.memory_space<vmem>>, vector<1x1x128xf32>
    %78 = vector.shape_cast %77 : vector<1x1x128xf32> to vector<1x128xf32>
    %79 = vector.broadcast %78 : vector<1x128xf32> to vector<128x128xf32>
    %80 = arith.addf %76, %79 : vector<128x128xf32>
    %c0_54 = arith.constant 0 : index
    %c0_55 = arith.constant 0 : index
    %81 = vector.load %arg5[%c0_54, %c0_55] : memref<128x128xf32, #tpu.memory_space<vmem>>, vector<128x128xf32>
    tpu.vector_store %arg5[%c0_54, %c0_55], %80 {strides = array<i32>} : memref<128x128xf32, #tpu.memory_space<vmem>>, vector<128x128xf32>,
    return
  }
}

</mosaic_0001>

<llo_original>
// kernel: tpu_custom_call.1
$region0: #{tpu_custom_call.1}
  #allocation0 [shape = 'u32[]', space=smem, size = 0x4, offset = 0x4, fixed_abs, tag = 'smem constant byte address 0x4 - core index']
  #allocation1 [shape = 'u32[72,128]{1,0:T(1,128)}', space=vmem, size = 0x9000, scoped, tag = 'internal scratch']
  %s0 = inlined_call_operand.hbm [shape: bf16[128,128], index: 0, kind: input, shape index: {}]
  %s1 = inlined_call_operand.hbm [shape: bf16[128,128], index: 1, kind: input, shape index: {}]
  %s2 = inlined_call_operand.hbm [shape: bf16[6,128,128], index: 2, kind: input, shape index: {}]
  %s3 = inlined_call_operand.hbm [shape: f32[6,1,128], index: 3, kind: input, shape index: {}]
  %s4 = inlined_call_operand.hbm [shape: f32[128,128], index: 4, kind: output, shape index: {0}]
  %s5 = inlined_call_operand.hbm [shape: f32[128,128], index: 5, kind: output, shape index: {1}]
  %6 = xla_tuple %s4, %s5
  %s7 = sld [smem:[#allocation0]]
  $region50: #{tpu_custom_call.1} parent=0
    _
  %s9 = ssub.s32 1, %s7
  %s10 = scalar_select 0, %s9, %s7
  $region1: #{tpu_custom_call.1} parent=0
    #allocation2 [shape = 'u8[32768]{0}', space=vmem, size = 0x8000, scoped, tag = 'input window, operand 0, single buffered']
    #allocation3 [shape = 's32[1]{0}', space=sflag, size = 0x4, scoped, tag = 'scoped memory for tpu_custom_call.1']
    #allocation4 [shape = 's32[1]{0}', space=sflag, size = 0x4, scoped, tag = 'scoped memory for tpu_custom_call.1']
    #allocation5 [shape = 'u8[32768]{0}', space=vmem, size = 0x8000, scoped, tag = 'input window, operand 1, single buffered']
    #allocation6 [shape = 's32[1]{0}', space=sflag, size = 0x4, scoped, tag = 'scoped memory for tpu_custom_call.1']
    #allocation7 [shape = 'u8[196608]{0}', space=vmem, size = 0x30000, scoped, tag = 'input window, operand 2, single buffered']
    #allocation8 [shape = 'u8[3072]{0}', space=vmem, size = 0xc00, scoped, tag = 'input window, operand 3, single buffered']
    #allocation9 [shape = 's32[1]{0}', space=sflag, size = 0x4, scoped, tag = 'scoped memory for tpu_custom_call.1']
    #allocation10 [shape = 'u8[65536]{0}', space=vmem, size = 0x10000, scoped, tag = 'output window, operand 0, single buffered']
    #allocation11 [shape = 'u8[65536]{0}', space=vmem, size = 0x10000, scoped, tag = 'output window, operand 1, single buffered']
    #allocation12 [shape = 's32[1]{0}', space=sflag, size = 0x4, scoped, tag = 'scoped memory for tpu_custom_call.1']
    %11 = vsyncpa [#allocation3], 0
    %12 = vsyncpa [#allocation6], 0
    %13 = vsyncpa [#allocation9], 0
    %14 = vsyncpa [#allocation4], 0
    %15 = vsyncpa [#allocation12], 0
    // Predicated region
    $region2: #{tpu_custom_call.1} parent=1 // pred_check
      _
    $region3: #{tpu_custom_call.1} parent=1 // pred_check_branch
      %17 = sbr.rel (0) target = $region5
    $region4: #{tpu_custom_call.1} parent=1 // pred_region
      %19 = vsyncadd [#allocation3], 0
      %s20 = sshll.u32 %s0, 4
      %s21 = int_to_ptr.hbm [resolvable:$true] %s20
      %s22 = sshll.u32 [#allocation2], 4
      %s23 = int_to_ptr.vmem [resolvable:$true] %s22
      %28 = dma.hbm_to_vmem [thread:$0]  %s21, 1024, %s23, [#allocation3], 64, 64, 4
    $region5: #{tpu_custom_call.1} parent=1 // pred_fallthru
      _
    // Predicated region
    $region6: #{tpu_custom_call.1} parent=1 // pred_check
      _
    $region7: #{tpu_custom_call.1} parent=1 // pred_check_branch
      %30 = sbr.rel (0) target = $region9
    $region8: #{tpu_custom_call.1} parent=1 // pred_region
      %32 = vsyncadd [#allocation6], 0
      %s33 = sshll.u32 %s1, 4
      %s34 = int_to_ptr.hbm [resolvable:$true] %s33
      %s35 = sshll.u32 [#allocation5], 4
      %s36 = int_to_ptr.vmem [resolvable:$true] %s35
      %41 = dma.hbm_to_vmem [thread:$0]  %s34, 1024, %s36, [#allocation6], 64, 64, 4
    $region9: #{tpu_custom_call.1} parent=1 // pred_fallthru
      _
    // Predicated region
    $region10: #{tpu_custom_call.1} parent=1 // pred_check
      _
    $region11: #{tpu_custom_call.1} parent=1 // pred_check_branch
      %43 = sbr.rel (0) target = $region13
    $region12: #{tpu_custom_call.1} parent=1 // pred_region
      %45 = vsyncadd [#allocation6], 0
      %s46 = sshll.u32 %s2, 4
      %s47 = int_to_ptr.hbm [resolvable:$true] %s46
      %s48 = sshll.u32 [#allocation7], 4
      %s49 = int_to_ptr.vmem [resolvable:$true] %s48
      %54 = dma.hbm_to_vmem [thread:$0]  %s47, 6144, %s49, [#allocation6], 64, 64, 4
    $region13: #{tpu_custom_call.1} parent=1 // pred_fallthru
      _
    // Predicated region
    $region14: #{tpu_custom_call.1} parent=1 // pred_check
      _
    $region15: #{tpu_custom_call.1} parent=1 // pred_check_branch
      %56 = sbr.rel (0) target = $region17
    $region16: #{tpu_custom_call.1} parent=1 // pred_region
      %58 = vsyncadd [#allocation9], 0
      %s59 = sshll.u32 %s3, 4
      %s60 = int_to_ptr.hbm [resolvable:$true] %s59
      %s61 = sshll.u32 [#allocation8], 4
      %s62 = int_to_ptr.vmem [resolvable:$true] %s61
      %67 = dma.hbm_to_vmem [thread:$0]  %s60, 96, %s62, [#allocation9], 16, 16, 1
    $region17: #{tpu_custom_call.1} parent=1 // pred_fallthru
      _
    // Predicated region
    $region18: #{tpu_custom_call.1} parent=1 // pred_check
      _
    $region19: #{tpu_custom_call.1} parent=1 // pred_check_branch
      %69 = sbr.rel (0) target = $region21
    $region20: #{tpu_custom_call.1} parent=1 // pred_region
      %71 = dma.done [#allocation3], 1024
    $region21: #{tpu_custom_call.1} parent=1 // pred_fallthru
      _
    // Predicated region
    $region22: #{tpu_custom_call.1} parent=1 // pred_check
      _
    $region23: #{tpu_custom_call.1} parent=1 // pred_check_branch
      %73 = sbr.rel (0) target = $region25
    $region24: #{tpu_custom_call.1} parent=1 // pred_region
      %75 = dma.done [#allocation6], 1024
    $region25: #{tpu_custom_call.1} parent=1 // pred_fallthru
      _
    // Predicated region
    $region26: #{tpu_custom_call.1} parent=1 // pred_check
      _
    $region27: #{tpu_custom_call.1} parent=1 // pred_check_branch
      %77 = sbr.rel (0) target = $region29
    $region28: #{tpu_custom_call.1} parent=1 // pred_region
      %79 = dma.done [#allocation6], 6144
    $region29: #{tpu_custom_call.1} parent=1 // pred_fallthru
      _
    // Predicated region
    $region30: #{tpu_custom_call.1} parent=1 // pred_check
      _
    $region31: #{tpu_custom_call.1} parent=1 // pred_check_branch
      %81 = sbr.rel (0) target = $region33
    $region32: #{tpu_custom_call.1} parent=1 // pred_region
      %83 = dma.done [#allocation9], 96
    $region33: #{tpu_custom_call.1} parent=1 // pred_fallthru
      _
    %v84 = vld [vmem:[#allocation5] sm:$0xf]
    %v85 = vld [vmem:[#allocation5 + $0x4] sm:$0xf]
    %v86 = vld [vmem:[#allocation5 + $0x8] sm:$0xf]
    %v87 = vld [vmem:[#allocation5 + $0xc] sm:$0xf]
    %v88 = vld [vmem:[#allocation5 + $0x10] sm:$0xf]
    %v89 = vld [vmem:[#allocation5 + $0x14] sm:$0xf]
    %v90 = vld [vmem:[#allocation5 + $0x18] sm:$0xf]
    %v91 = vld [vmem:[#allocation5 + $0x1c] sm:$0xf]
    %v92 = vld [vmem:[#allocation5 + $0x20] sm:$0xf]
    %v93 = vld [vmem:[#allocation5 + $0x24] sm:$0xf]
    %v94 = vld [vmem:[#allocation5 + $0x28] sm:$0xf]
    %v95 = vld [vmem:[#allocation5 + $0x2c] sm:$0xf]
    %v96 = vld [vmem:[#allocation5 + $0x30] sm:$0xf]
    %v97 = vld [vmem:[#allocation5 + $0x34] sm:$0xf]
    %v98 = vld [vmem:[#allocation5 + $0x38] sm:$0xf]
    %v99 = vld [vmem:[#allocation5 + $0x3c] sm:$0xf]
    %v100 = vld [vmem:[#allocation2] sm:$0xf]
    %v101 = vld [vmem:[#allocation2 + $0x4] sm:$0xf]
    %v102 = vld [vmem:[#allocation2 + $0x8] sm:$0xf]
    %v103 = vld [vmem:[#allocation2 + $0xc] sm:$0xf]
    %v104 = vld [vmem:[#allocation2 + $0x10] sm:$0xf]
    %v105 = vld [vmem:[#allocation2 + $0x14] sm:$0xf]
    %v106 = vld [vmem:[#allocation2 + $0x18] sm:$0xf]
    %v107 = vld [vmem:[#allocation2 + $0x1c] sm:$0xf]
    %v108 = vld [vmem:[#allocation2 + $0x20] sm:$0xf]
    %v109 = vld [vmem:[#allocation2 + $0x24] sm:$0xf]
    %v110 = vld [vmem:[#allocation2 + $0x28] sm:$0xf]
    %v111 = vld [vmem:[#allocation2 + $0x2c] sm:$0xf]
    %v112 = vld [vmem:[#allocation2 + $0x30] sm:$0xf]
    %v113 = vld [vmem:[#allocation2 + $0x34] sm:$0xf]
    %v114 = vld [vmem:[#allocation2 + $0x38] sm:$0xf]
    %v115 = vld [vmem:[#allocation2 + $0x3c] sm:$0xf]
    %v132 = vunpack.c.l.b16 %v84
    %v133 = vunpack.c.l.b16 %v85
    %v134 = vunpack.c.l.b16 %v86
    %v135 = vunpack.c.l.b16 %v87
    %v136 = vunpack.c.l.b16 %v88
    %v137 = vunpack.c.l.b16 %v89
    %v138 = vunpack.c.l.b16 %v90
    %v139 = vunpack.c.l.b16 %v91
    %v140 = vunpack.c.l.b16 %v92
    %v141 = vunpack.c.l.b16 %v93
    %v142 = vunpack.c.l.b16 %v94
    %v143 = vunpack.c.l.b16 %v95
    %v144 = vunpack.c.l.b16 %v96
    %v145 = vunpack.c.l.b16 %v97
    %v146 = vunpack.c.l.b16 %v98
    %v147 = vunpack.c.l.b16 %v99
    %v148 = vpack.c.b16 %v133, %v132
    %v149 = vpack.c.b16 %v135, %v134
    %v150 = vpack.c.b16 %v137, %v136
    %v151 = vpack.c.b16 %v139, %v138
    %v152 = vpack.c.b16 %v141, %v140
    %v153 = vpack.c.b16 %v143, %v142
    %v154 = vpack.c.b16 %v145, %v144
    %v155 = vpack.c.b16 %v147, %v146
    %v180 = vunpack.c.l.b16 %v100
    %v181 = vunpack.c.l.b16 %v101
    %v182 = vunpack.c.l.b16 %v102
    %v183 = vunpack.c.l.b16 %v103
    %v184 = vunpack.c.l.b16 %v104
    %v185 = vunpack.c.l.b16 %v105
    %v186 = vunpack.c.l.b16 %v106
    %v187 = vunpack.c.l.b16 %v107
    %v188 = vunpack.c.l.b16 %v108
    %v189 = vunpack.c.l.b16 %v109
    %v190 = vunpack.c.l.b16 %v110
    %v191 = vunpack.c.l.b16 %v111
    %v192 = vunpack.c.l.b16 %v112
    %v193 = vunpack.c.l.b16 %v113
    %v194 = vunpack.c.l.b16 %v114
    %v195 = vunpack.c.l.b16 %v115
    %v196 = vpack.c.b16 %v181, %v180
    %v197 = vpack.c.b16 %v183, %v182
    %v198 = vpack.c.b16 %v185, %v184
    %v199 = vpack.c.b16 %v187, %v186
    %v200 = vpack.c.b16 %v189, %v188
    %v201 = vpack.c.b16 %v191, %v190
    %v202 = vpack.c.b16 %v193, %v192
    %v203 = vpack.c.b16 %v195, %v194
    %212 = vmatpush.bf16.msra.mxu0 %v203
    %213 = vmatpush.bf16.msra.mxu0 %v202
    %214 = vmatpush.bf16.msra.mxu0 %v201
    %215 = vmatpush.bf16.msra.mxu0 %v200
    %216 = vmatpush.bf16.msra.mxu0 %v199
    %217 = vmatpush.bf16.msra.mxu0 %v198
    %218 = vmatpush.bf16.msra.mxu0 %v197
    %219 = vmatpush.bf16.msra.mxu0 %v196
    %220 = vmatmul.bf16.gmra.mxu0 %v148
    %v221 = vpop.f32.mrf.mxu0
    %v222 = vadd.f32 0.0, %v221
    %v223 = vpop.f32.mrf.mxu0
    %v224 = vadd.f32 0.0, %v223
    %225 = vmatmul.bf16.gmra.mxu0 %v149
    %v226 = vpop.f32.mrf.mxu0
    %v227 = vadd.f32 0.0, %v226
    %v228 = vpop.f32.mrf.mxu0
    %v229 = vadd.f32 0.0, %v228
    %230 = vmatmul.bf16.gmra.mxu0 %v150
    %v231 = vpop.f32.mrf.mxu0
    %v232 = vadd.f32 0.0, %v231
    %v233 = vpop.f32.mrf.mxu0
    %v234 = vadd.f32 0.0, %v233
    %235 = vmatmul.bf16.gmra.mxu0 %v151
    %v236 = vpop.f32.mrf.mxu0
    %v237 = vadd.f32 0.0, %v236
    %v238 = vpop.f32.mrf.mxu0
    %v239 = vadd.f32 0.0, %v238
    %240 = vmatmul.bf16.gmra.mxu0 %v152
    %v241 = vpop.f32.mrf.mxu0
    %v242 = vadd.f32 0.0, %v241
    %v243 = vpop.f32.mrf.mxu0
    %v244 = vadd.f32 0.0, %v243
    %245 = vmatmul.bf16.gmra.mxu0 %v153
    %v246 = vpop.f32.mrf.mxu0
    %v247 = vadd.f32 0.0, %v246
    %v248 = vpop.f32.mrf.mxu0
    %v249 = vadd.f32 0.0, %v248
    %250 = vmatmul.bf16.gmra.mxu0 %v154
    %v251 = vpop.f32.mrf.mxu0
    %v252 = vadd.f32 0.0, %v251
    %v253 = vpop.f32.mrf.mxu0
    %v254 = vadd.f32 0.0, %v253
    %255 = vmatmul.bf16.gmra.mxu0 %v155
    %v256 = vpop.f32.mrf.mxu0
    %v257 = vadd.f32 0.0, %v256
    %v258 = vpop.f32.mrf.mxu0
    %v259 = vadd.f32 0.0, %v258
    %260 = vdwg.mxu0
    %v261 = vpack.c.bf16 %v224, %v222
    %v262 = vpack.c.bf16 %v229, %v227
    %v263 = vpack.c.bf16 %v234, %v232
    %v264 = vpack.c.bf16 %v239, %v237
    %v265 = vpack.c.bf16 %v244, %v242
    %v266 = vpack.c.bf16 %v249, %v247
    %v267 = vpack.c.bf16 %v254, %v252
    %v268 = vpack.c.bf16 %v259, %v257
    %v269 = vld [vmem:[#allocation7] sm:$0xf]
    %v270 = vld [vmem:[#allocation7 + $0x4] sm:$0xf]
    %v271 = vld [vmem:[#allocation7 + $0x8] sm:$0xf]
    %v272 = vld [vmem:[#allocation7 + $0xc] sm:$0xf]
    %v273 = vld [vmem:[#allocation7 + $0x10] sm:$0xf]
    %v274 = vld [vmem:[#allocation7 + $0x14] sm:$0xf]
    %v275 = vld [vmem:[#allocation7 + $0x18] sm:$0xf]
    %v276 = vld [vmem:[#allocation7 + $0x1c] sm:$0xf]
    %v277 = vld [vmem:[#allocation7 + $0x20] sm:$0xf]
    %v278 = vld [vmem:[#allocation7 + $0x24] sm:$0xf]
    %v279 = vld [vmem:[#allocation7 + $0x28] sm:$0xf]
    %v280 = vld [vmem:[#allocation7 + $0x2c] sm:$0xf]
    %v281 = vld [vmem:[#allocation7 + $0x30] sm:$0xf]
    %v282 = vld [vmem:[#allocation7 + $0x34] sm:$0xf]
    %v283 = vld [vmem:[#allocation7 + $0x38] sm:$0xf]
    %v284 = vld [vmem:[#allocation7 + $0x3c] sm:$0xf]
    %v285 = vld [vmem:[#allocation8] sm:$0x1]
    %v287 = vperm.slane %v285, 0
    %v305 = vunpack.c.l.b16 %v269
    %v306 = vunpack.c.l.b16 %v270
    %v307 = vunpack.c.l.b16 %v271
    %v308 = vunpack.c.l.b16 %v272
    %v309 = vunpack.c.l.b16 %v273
    %v310 = vunpack.c.l.b16 %v274
    %v311 = vunpack.c.l.b16 %v275
    %v312 = vunpack.c.l.b16 %v276
    %v313 = vunpack.c.l.b16 %v277
    %v314 = vunpack.c.l.b16 %v278
    %v315 = vunpack.c.l.b16 %v279
    %v316 = vunpack.c.l.b16 %v280
    %v317 = vunpack.c.l.b16 %v281
    %v318 = vunpack.c.l.b16 %v282
    %v319 = vunpack.c.l.b16 %v283
    %v320 = vunpack.c.l.b16 %v284
    %v321 = vpack.c.b16 %v306, %v305
    %v322 = vpack.c.b16 %v308, %v307
    %v323 = vpack.c.b16 %v310, %v309
    %v324 = vpack.c.b16 %v312, %v311
    %v325 = vpack.c.b16 %v314, %v313
    %v326 = vpack.c.b16 %v316, %v315
    %v327 = vpack.c.b16 %v318, %v317
    %v328 = vpack.c.b16 %v320, %v319
    %337 = vmatpush.bf16.msra.mxu0 %v328
    %338 = vmatpush.bf16.msra.mxu0 %v327
    %339 = vmatpush.bf16.msra.mxu0 %v326
    %340 = vmatpush.bf16.msra.mxu0 %v325
    %341 = vmatpush.bf16.msra.mxu0 %v324
    %342 = vmatpush.bf16.msra.mxu0 %v323
    %343 = vmatpush.bf16.msra.mxu0 %v322
    %344 = vmatpush.bf16.msra.mxu0 %v321
    %345 = vmatmul.bf16.gmra.mxu0 %v261
    %v346 = vpop.f32.mrf.mxu0
    %v347 = vadd.f32 %v287, %v346
    %v348 = vpop.f32.mrf.mxu0
    %v349 = vadd.f32 %v287, %v348
    %350 = vmatmul.bf16.gmra.mxu0 %v262
    %v351 = vpop.f32.mrf.mxu0
    %v352 = vadd.f32 %v287, %v351
    %v353 = vpop.f32.mrf.mxu0
    %v354 = vadd.f32 %v287, %v353
    %355 = vmatmul.bf16.gmra.mxu0 %v263
    %v356 = vpop.f32.mrf.mxu0
    %v357 = vadd.f32 %v287, %v356
    %v358 = vpop.f32.mrf.mxu0
    %v359 = vadd.f32 %v287, %v358
    %360 = vmatmul.bf16.gmra.mxu0 %v264
    %v361 = vpop.f32.mrf.mxu0
    %v362 = vadd.f32 %v287, %v361
    %v363 = vpop.f32.mrf.mxu0
    %v364 = vadd.f32 %v287, %v363
    %365 = vmatmul.bf16.gmra.mxu0 %v265
    %v366 = vpop.f32.mrf.mxu0
    %v367 = vadd.f32 %v287, %v366
    %v368 = vpop.f32.mrf.mxu0
    %v369 = vadd.f32 %v287, %v368
    %370 = vmatmul.bf16.gmra.mxu0 %v266
    %v371 = vpop.f32.mrf.mxu0
    %v372 = vadd.f32 %v287, %v371
    %v373 = vpop.f32.mrf.mxu0
    %v374 = vadd.f32 %v287, %v373
    %375 = vmatmul.bf16.gmra.mxu0 %v267
    %v376 = vpop.f32.mrf.mxu0
    %v377 = vadd.f32 %v287, %v376
    %v378 = vpop.f32.mrf.mxu0
    %v379 = vadd.f32 %v287, %v378
    %380 = vmatmul.bf16.gmra.mxu0 %v268
    %v381 = vpop.f32.mrf.mxu0
    %v382 = vadd.f32 %v287, %v381
    %v383 = vpop.f32.mrf.mxu0
    %v384 = vadd.f32 %v287, %v383
    %385 = vdwg.mxu0
    %vm386 = vcmp.gt.f32.partialorder %v347, 0.0
    %vm387 = vcmp.gt.f32.partialorder %v349, 0.0
    %vm388 = vcmp.gt.f32.partialorder %v352, 0.0
    %vm389 = vcmp.gt.f32.partialorder %v354, 0.0
    %vm390 = vcmp.gt.f32.partialorder %v357, 0.0
    %vm391 = vcmp.gt.f32.partialorder %v359, 0.0
    %vm392 = vcmp.gt.f32.partialorder %v362, 0.0
    %vm393 = vcmp.gt.f32.partialorder %v364, 0.0
    %vm394 = vcmp.gt.f32.partialorder %v367, 0.0
    %vm395 = vcmp.gt.f32.partialorder %v369, 0.0
    %vm396 = vcmp.gt.f32.partialorder %v372, 0.0
    %vm397 = vcmp.gt.f32.partialorder %v374, 0.0
    %vm398 = vcmp.gt.f32.partialorder %v377, 0.0
    %vm399 = vcmp.gt.f32.partialorder %v379, 0.0
    %vm400 = vcmp.gt.f32.partialorder %v382, 0.0
    %vm401 = vcmp.gt.f32.partialorder %v384, 0.0
    %v402 = vmul.f32 %v347, 0.01
    %v403 = vmul.f32 %v349, 0.01
    %v404 = vmul.f32 %v352, 0.01
    %v405 = vmul.f32 %v354, 0.01
    %v406 = vmul.f32 %v357, 0.01
    %v407 = vmul.f32 %v359, 0.01
    %v408 = vmul.f32 %v362, 0.01
    %v409 = vmul.f32 %v364, 0.01
    %v410 = vmul.f32 %v367, 0.01
    %v411 = vmul.f32 %v369, 0.01
    %v412 = vmul.f32 %v372, 0.01
    %v413 = vmul.f32 %v374, 0.01
    %v414 = vmul.f32 %v377, 0.01
    %v415 = vmul.f32 %v379, 0.01
    %v416 = vmul.f32 %v382, 0.01
    %v417 = vmul.f32 %v384, 0.01
    %v418 = vsel %vm386, %v347, %v402
    %v419 = vsel %vm387, %v349, %v403
    %v420 = vsel %vm388, %v352, %v404
    %v421 = vsel %vm389, %v354, %v405
    %v422 = vsel %vm390, %v357, %v406
    %v423 = vsel %vm391, %v359, %v407
    %v424 = vsel %vm392, %v362, %v408
    %v425 = vsel %vm393, %v364, %v409
    %v426 = vsel %vm394, %v367, %v410
    %v427 = vsel %vm395, %v369, %v411
    %v428 = vsel %vm396, %v372, %v412
    %v429 = vsel %vm397, %v374, %v413
    %v430 = vsel %vm398, %v377, %v414
    %v431 = vsel %vm399, %v379, %v415
    %v432 = vsel %vm400, %v382, %v416
    %v433 = vsel %vm401, %v384, %v417
    %v434 = vpack.c.bf16 %v419, %v418
    %v435 = vpack.c.bf16 %v421, %v420
    %v436 = vpack.c.bf16 %v423, %v422
    %v437 = vpack.c.bf16 %v425, %v424
    %v438 = vpack.c.bf16 %v427, %v426
    %v439 = vpack.c.bf16 %v429, %v428
    %v440 = vpack.c.bf16 %v431, %v430
    %v441 = vpack.c.bf16 %v433, %v432
    %442 = vmatpush.bf16.msra.mxu0 %v441
    %443 = vmatpush.bf16.msra.mxu0 %v440
    %444 = vmatpush.bf16.msra.mxu0 %v439
    %445 = vmatpush.bf16.msra.mxu0 %v438
    %446 = vmatpush.bf16.msra.mxu0 %v437
    %447 = vmatpush.bf16.msra.mxu0 %v436
    %448 = vmatpush.bf16.msra.mxu0 %v435
    %449 = vmatpush.bf16.msra.mxu0 %v434
    %450 = vmatmul.bf16.gmra.mxu0 %v148
    %v451 = vpop.f32.mrf.mxu0
    %v452 = vadd.f32 0.0, %v451
    %v453 = vpop.f32.mrf.mxu0
    %v454 = vadd.f32 0.0, %v453
    %455 = vmatmul.bf16.gmra.mxu0 %v149
    %v456 = vpop.f32.mrf.mxu0
    %v457 = vadd.f32 0.0, %v456
    %v458 = vpop.f32.mrf.mxu0
    %v459 = vadd.f32 0.0, %v458
    %460 = vmatmul.bf16.gmra.mxu0 %v150
    %v461 = vpop.f32.mrf.mxu0
    %v462 = vadd.f32 0.0, %v461
    %v463 = vpop.f32.mrf.mxu0
    %v464 = vadd.f32 0.0, %v463
    %465 = vmatmul.bf16.gmra.mxu0 %v151
    %v466 = vpop.f32.mrf.mxu0
    %v467 = vadd.f32 0.0, %v466
    %v468 = vpop.f32.mrf.mxu0
    %v469 = vadd.f32 0.0, %v468
    %470 = vmatmul.bf16.gmra.mxu0 %v152
    %v471 = vpop.f32.mrf.mxu0
    %v472 = vadd.f32 0.0, %v471
    %v473 = vpop.f32.mrf.mxu0
    %v474 = vadd.f32 0.0, %v473
    %475 = vmatmul.bf16.gmra.mxu0 %v153
    %v476 = vpop.f32.mrf.mxu0
    %v477 = vadd.f32 0.0, %v476
    %v478 = vpop.f32.mrf.mxu0
    %v479 = vadd.f32 0.0, %v478
    %480 = vmatmul.bf16.gmra.mxu0 %v154
    %v481 = vpop.f32.mrf.mxu0
    %v482 = vadd.f32 0.0, %v481
    %v483 = vpop.f32.mrf.mxu0
    %v484 = vadd.f32 0.0, %v483
    %485 = vmatmul.bf16.gmra.mxu0 %v155
    %v486 = vpop.f32.mrf.mxu0
    %v487 = vadd.f32 0.0, %v486
    %v488 = vpop.f32.mrf.mxu0
    %v489 = vadd.f32 0.0, %v488
    %490 = vdwg.mxu0
    %v491 = vpack.c.bf16 %v454, %v452
    %v492 = vpack.c.bf16 %v459, %v457
    %v493 = vpack.c.bf16 %v464, %v462
    %v494 = vpack.c.bf16 %v469, %v467
    %v495 = vpack.c.bf16 %v474, %v472
    %v496 = vpack.c.bf16 %v479, %v477
    %v497 = vpack.c.bf16 %v484, %v482
    %v498 = vpack.c.bf16 %v489, %v487
    %s499 = scalar_lea.vmem [#allocation7], 64
    %v500 = vld [vmem:[%s499] sm:$0xf]
    %v501 = vld [vmem:[%s499 + $0x4] sm:$0xf]
    %v502 = vld [vmem:[%s499 + $0x8] sm:$0xf]
    %v503 = vld [vmem:[%s499 + $0xc] sm:$0xf]
    %v504 = vld [vmem:[%s499 + $0x10] sm:$0xf]
    %v505 = vld [vmem:[%s499 + $0x14] sm:$0xf]
    %v506 = vld [vmem:[%s499 + $0x18] sm:$0xf]
    %v507 = vld [vmem:[%s499 + $0x1c] sm:$0xf]
    %v508 = vld [vmem:[%s499 + $0x20] sm:$0xf]
    %v509 = vld [vmem:[%s499 + $0x24] sm:$0xf]
    %v510 = vld [vmem:[%s499 + $0x28] sm:$0xf]
    %v511 = vld [vmem:[%s499 + $0x2c] sm:$0xf]
    %v512 = vld [vmem:[%s499 + $0x30] sm:$0xf]
    %v513 = vld [vmem:[%s499 + $0x34] sm:$0xf]
    %v514 = vld [vmem:[%s499 + $0x38] sm:$0xf]
    %v515 = vld [vmem:[%s499 + $0x3c] sm:$0xf]
    %s516 = scalar_lea.vmem [#allocation8], 1
    %v517 = vld [vmem:[%s516] sm:$0x1]
    %v519 = vperm.slane %v517, 0
    %v537 = vunpack.c.l.b16 %v500
    %v538 = vunpack.c.l.b16 %v501
    %v539 = vunpack.c.l.b16 %v502
    %v540 = vunpack.c.l.b16 %v503
    %v541 = vunpack.c.l.b16 %v504
    %v542 = vunpack.c.l.b16 %v505
    %v543 = vunpack.c.l.b16 %v506
    %v544 = vunpack.c.l.b16 %v507
    %v545 = vunpack.c.l.b16 %v508
    %v546 = vunpack.c.l.b16 %v509
    %v547 = vunpack.c.l.b16 %v510
    %v548 = vunpack.c.l.b16 %v511
    %v549 = vunpack.c.l.b16 %v512
    %v550 = vunpack.c.l.b16 %v513
    %v551 = vunpack.c.l.b16 %v514
    %v552 = vunpack.c.l.b16 %v515
    %v553 = vpack.c.b16 %v538, %v537
    %v554 = vpack.c.b16 %v540, %v539
    %v555 = vpack.c.b16 %v542, %v541
    %v556 = vpack.c.b16 %v544, %v543
    %v557 = vpack.c.b16 %v546, %v545
    %v558 = vpack.c.b16 %v548, %v547
    %v559 = vpack.c.b16 %v550, %v549
    %v560 = vpack.c.b16 %v552, %v551
    %569 = vmatpush.bf16.msra.mxu0 %v560
    %570 = vmatpush.bf16.msra.mxu0 %v559
    %571 = vmatpush.bf16.msra.mxu0 %v558
    %572 = vmatpush.bf16.msra.mxu0 %v557
    %573 = vmatpush.bf16.msra.mxu0 %v556
    %574 = vmatpush.bf16.msra.mxu0 %v555
    %575 = vmatpush.bf16.msra.mxu0 %v554
    %576 = vmatpush.bf16.msra.mxu0 %v553
    %577 = vmatmul.bf16.gmra.mxu0 %v491
    %v578 = vpop.f32.mrf.mxu0
    %v579 = vadd.f32 %v519, %v578
    %v580 = vpop.f32.mrf.mxu0
    %v581 = vadd.f32 %v519, %v580
    %582 = vmatmul.bf16.gmra.mxu0 %v492
    %v583 = vpop.f32.mrf.mxu0
    %v584 = vadd.f32 %v519, %v583
    %v585 = vpop.f32.mrf.mxu0
    %v586 = vadd.f32 %v519, %v585
    %587 = vmatmul.bf16.gmra.mxu0 %v493
    %v588 = vpop.f32.mrf.mxu0
    %v589 = vadd.f32 %v519, %v588
    %v590 = vpop.f32.mrf.mxu0
    %v591 = vadd.f32 %v519, %v590
    %592 = vmatmul.bf16.gmra.mxu0 %v494
    %v593 = vpop.f32.mrf.mxu0
    %v594 = vadd.f32 %v519, %v593
    %v595 = vpop.f32.mrf.mxu0
    %v596 = vadd.f32 %v519, %v595
    %597 = vmatmul.bf16.gmra.mxu0 %v495
    %v598 = vpop.f32.mrf.mxu0
    %v599 = vadd.f32 %v519, %v598
    %v600 = vpop.f32.mrf.mxu0
    %v601 = vadd.f32 %v519, %v600
    %602 = vmatmul.bf16.gmra.mxu0 %v496
    %v603 = vpop.f32.mrf.mxu0
    %v604 = vadd.f32 %v519, %v603
    %v605 = vpop.f32.mrf.mxu0
    %v606 = vadd.f32 %v519, %v605
    %607 = vmatmul.bf16.gmra.mxu0 %v497
    %v608 = vpop.f32.mrf.mxu0
    %v609 = vadd.f32 %v519, %v608
    %v610 = vpop.f32.mrf.mxu0
    %v611 = vadd.f32 %v519, %v610
    %612 = vmatmul.bf16.gmra.mxu0 %v498
    %v613 = vpop.f32.mrf.mxu0
    %v614 = vadd.f32 %v519, %v613
    %v615 = vpop.f32.mrf.mxu0
    %v616 = vadd.f32 %v519, %v615
    %617 = vdwg.mxu0
    %vm618 = vcmp.gt.f32.partialorder %v579, 0.0
    %vm619 = vcmp.gt.f32.partialorder %v581, 0.0
    %vm620 = vcmp.gt.f32.partialorder %v584, 0.0
    %vm621 = vcmp.gt.f32.partialorder %v586, 0.0
    %vm622 = vcmp.gt.f32.partialorder %v589, 0.0
    %vm623 = vcmp.gt.f32.partialorder %v591, 0.0
    %vm624 = vcmp.gt.f32.partialorder %v594, 0.0
    %vm625 = vcmp.gt.f32.partialorder %v596, 0.0
    %vm626 = vcmp.gt.f32.partialorder %v599, 0.0
    %vm627 = vcmp.gt.f32.partialorder %v601, 0.0
    %vm628 = vcmp.gt.f32.partialorder %v604, 0.0
    %vm629 = vcmp.gt.f32.partialorder %v606, 0.0
    %vm630 = vcmp.gt.f32.partialorder %v609, 0.0
    %vm631 = vcmp.gt.f32.partialorder %v611, 0.0
    %vm632 = vcmp.gt.f32.partialorder %v614, 0.0
    %vm633 = vcmp.gt.f32.partialorder %v616, 0.0
    %v634 = vmul.f32 %v579, 0.01
    %v635 = vmul.f32 %v581, 0.01
    %v636 = vmul.f32 %v584, 0.01
    %v637 = vmul.f32 %v586, 0.01
    %v638 = vmul.f32 %v589, 0.01
    %v639 = vmul.f32 %v591, 0.01
    %v640 = vmul.f32 %v594, 0.01
    %v641 = vmul.f32 %v596, 0.01
    %v642 = vmul.f32 %v599, 0.01
    %v643 = vmul.f32 %v601, 0.01
    %v644 = vmul.f32 %v604, 0.01
    %v645 = vmul.f32 %v606, 0.01
    %v646 = vmul.f32 %v609, 0.01
    %v647 = vmul.f32 %v611, 0.01
    %v648 = vmul.f32 %v614, 0.01
    %v649 = vmul.f32 %v616, 0.01
    %v650 = vsel %vm618, %v579, %v634
    %v651 = vsel %vm619, %v581, %v635
    %v652 = vsel %vm620, %v584, %v636
    %v653 = vsel %vm621, %v586, %v637
    %v654 = vsel %vm622, %v589, %v638
    %v655 = vsel %vm623, %v591, %v639
    %v656 = vsel %vm624, %v594, %v640
    %v657 = vsel %vm625, %v596, %v641
    %v658 = vsel %vm626, %v599, %v642
    %v659 = vsel %vm627, %v601, %v643
    %v660 = vsel %vm628, %v604, %v644
    %v661 = vsel %vm629, %v606, %v645
    %v662 = vsel %vm630, %v609, %v646
    %v663 = vsel %vm631, %v611, %v647
    %v664 = vsel %vm632, %v614, %v648
    %v665 = vsel %vm633, %v616, %v649
    %v666 = vpack.c.bf16 %v651, %v650
    %v667 = vpack.c.bf16 %v653, %v652
    %v668 = vpack.c.bf16 %v655, %v654
    %v669 = vpack.c.bf16 %v657, %v656
    %v670 = vpack.c.bf16 %v659, %v658
    %v671 = vpack.c.bf16 %v661, %v660
    %v672 = vpack.c.bf16 %v663, %v662
    %v673 = vpack.c.bf16 %v665, %v664
    %674 = vmatpush.bf16.msra.mxu0 %v673
    %675 = vmatpush.bf16.msra.mxu0 %v672
    %676 = vmatpush.bf16.msra.mxu0 %v671
    %677 = vmatpush.bf16.msra.mxu0 %v670
    %678 = vmatpush.bf16.msra.mxu0 %v669
    %679 = vmatpush.bf16.msra.mxu0 %v668
    %680 = vmatpush.bf16.msra.mxu0 %v667
    %681 = vmatpush.bf16.msra.mxu0 %v666
    %682 = vmatmul.bf16.gmra.mxu0 %v148
    %v683 = vpop.f32.mrf.mxu0
    %v684 = vadd.f32 0.0, %v683
    %v685 = vpop.f32.mrf.mxu0
    %v686 = vadd.f32 0.0, %v685
    %687 = vmatmul.bf16.gmra.mxu0 %v149
    %v688 = vpop.f32.mrf.mxu0
    %v689 = vadd.f32 0.0, %v688
    %v690 = vpop.f32.mrf.mxu0
    %v691 = vadd.f32 0.0, %v690
    %692 = vmatmul.bf16.gmra.mxu0 %v150
    %v693 = vpop.f32.mrf.mxu0
    %v694 = vadd.f32 0.0, %v693
    %v695 = vpop.f32.mrf.mxu0
    %v696 = vadd.f32 0.0, %v695
    %697 = vmatmul.bf16.gmra.mxu0 %v151
    %v698 = vpop.f32.mrf.mxu0
    %v699 = vadd.f32 0.0, %v698
    %v700 = vpop.f32.mrf.mxu0
    %v701 = vadd.f32 0.0, %v700
    %702 = vmatmul.bf16.gmra.mxu0 %v152
    %v703 = vpop.f32.mrf.mxu0
    %v704 = vadd.f32 0.0, %v703
    %v705 = vpop.f32.mrf.mxu0
    %v706 = vadd.f32 0.0, %v705
    %707 = vmatmul.bf16.gmra.mxu0 %v153
    %v708 = vpop.f32.mrf.mxu0
    %v709 = vadd.f32 0.0, %v708
    %v710 = vpop.f32.mrf.mxu0
    %v711 = vadd.f32 0.0, %v710
    %712 = vmatmul.bf16.gmra.mxu0 %v154
    %v713 = vpop.f32.mrf.mxu0
    %v714 = vadd.f32 0.0, %v713
    %v715 = vpop.f32.mrf.mxu0
    %v716 = vadd.f32 0.0, %v715
    %717 = vmatmul.bf16.gmra.mxu0 %v155
    %v718 = vpop.f32.mrf.mxu0
    %v719 = vadd.f32 0.0, %v718
    %v720 = vpop.f32.mrf.mxu0
    %v721 = vadd.f32 0.0, %v720
    %722 = vdwg.mxu0
    %v723 = vpack.c.bf16 %v686, %v684
    %v724 = vpack.c.bf16 %v691, %v689
    %v725 = vpack.c.bf16 %v696, %v694
    %v726 = vpack.c.bf16 %v701, %v699
    %v727 = vpack.c.bf16 %v706, %v704
    %v728 = vpack.c.bf16 %v711, %v709
    %v729 = vpack.c.bf16 %v716, %v714
    %v730 = vpack.c.bf16 %v721, %v719
    %s731 = scalar_lea.vmem [#allocation7], 128
    %v732 = vld [vmem:[%s731] sm:$0xf]
    %v733 = vld [vmem:[%s731 + $0x4] sm:$0xf]
    %v734 = vld [vmem:[%s731 + $0x8] sm:$0xf]
    %v735 = vld [vmem:[%s731 + $0xc] sm:$0xf]
    %v736 = vld [vmem:[%s731 + $0x10] sm:$0xf]
    %v737 = vld [vmem:[%s731 + $0x14] sm:$0xf]
    %v738 = vld [vmem:[%s731 + $0x18] sm:$0xf]
    %v739 = vld [vmem:[%s731 + $0x1c] sm:$0xf]
    %v740 = vld [vmem:[%s731 + $0x20] sm:$0xf]
    %v741 = vld [vmem:[%s731 + $0x24] sm:$0xf]
    %v742 = vld [vmem:[%s731 + $0x28] sm:$0xf]
    %v743 = vld [vmem:[%s731 + $0x2c] sm:$0xf]
    %v744 = vld [vmem:[%s731 + $0x30] sm:$0xf]
    %v745 = vld [vmem:[%s731 + $0x34] sm:$0xf]
    %v746 = vld [vmem:[%s731 + $0x38] sm:$0xf]
    %v747 = vld [vmem:[%s731 + $0x3c] sm:$0xf]
    %s748 = scalar_lea.vmem [#allocation8], 2
    %v749 = vld [vmem:[%s748] sm:$0x1]
    %v751 = vperm.slane %v749, 0
    %v769 = vunpack.c.l.b16 %v732
    %v770 = vunpack.c.l.b16 %v733
    %v771 = vunpack.c.l.b16 %v734
    %v772 = vunpack.c.l.b16 %v735
    %v773 = vunpack.c.l.b16 %v736
    %v774 = vunpack.c.l.b16 %v737
    %v775 = vunpack.c.l.b16 %v738
    %v776 = vunpack.c.l.b16 %v739
    %v777 = vunpack.c.l.b16 %v740
    %v778 = vunpack.c.l.b16 %v741
    %v779 = vunpack.c.l.b16 %v742
    %v780 = vunpack.c.l.b16 %v743
    %v781 = vunpack.c.l.b16 %v744
    %v782 = vunpack.c.l.b16 %v745
    %v783 = vunpack.c.l.b16 %v746
    %v784 = vunpack.c.l.b16 %v747
    %v785 = vpack.c.b16 %v770, %v769
    %v786 = vpack.c.b16 %v772, %v771
    %v787 = vpack.c.b16 %v774, %v773
    %v788 = vpack.c.b16 %v776, %v775
    %v789 = vpack.c.b16 %v778, %v777
    %v790 = vpack.c.b16 %v780, %v779
    %v791 = vpack.c.b16 %v782, %v781
    %v792 = vpack.c.b16 %v784, %v783
    %801 = vmatpush.bf16.msra.mxu0 %v792
    %802 = vmatpush.bf16.msra.mxu0 %v791
    %803 = vmatpush.bf16.msra.mxu0 %v790
    %804 = vmatpush.bf16.msra.mxu0 %v789
    %805 = vmatpush.bf16.msra.mxu0 %v788
    %806 = vmatpush.bf16.msra.mxu0 %v787
    %807 = vmatpush.bf16.msra.mxu0 %v786
    %808 = vmatpush.bf16.msra.mxu0 %v785
    %809 = vmatmul.bf16.gmra.mxu0 %v723
    %v810 = vpop.f32.mrf.mxu0
    %v811 = vadd.f32 %v751, %v810
    %v812 = vpop.f32.mrf.mxu0
    %v813 = vadd.f32 %v751, %v812
    %814 = vmatmul.bf16.gmra.mxu0 %v724
    %v815 = vpop.f32.mrf.mxu0
    %v816 = vadd.f32 %v751, %v815
    %v817 = vpop.f32.mrf.mxu0
    %v818 = vadd.f32 %v751, %v817
    %819 = vmatmul.bf16.gmra.mxu0 %v725
    %v820 = vpop.f32.mrf.mxu0
    %v821 = vadd.f32 %v751, %v820
    %v822 = vpop.f32.mrf.mxu0
    %v823 = vadd.f32 %v751, %v822
    %824 = vmatmul.bf16.gmra.mxu0 %v726
    %v825 = vpop.f32.mrf.mxu0
    %v826 = vadd.f32 %v751, %v825
    %v827 = vpop.f32.mrf.mxu0
    %v828 = vadd.f32 %v751, %v827
    %829 = vmatmul.bf16.gmra.mxu0 %v727
    %v830 = vpop.f32.mrf.mxu0
    %v831 = vadd.f32 %v751, %v830
    %v832 = vpop.f32.mrf.mxu0
    %v833 = vadd.f32 %v751, %v832
    %834 = vmatmul.bf16.gmra.mxu0 %v728
    %v835 = vpop.f32.mrf.mxu0
    %v836 = vadd.f32 %v751, %v835
    %v837 = vpop.f32.mrf.mxu0
    %v838 = vadd.f32 %v751, %v837
    %839 = vmatmul.bf16.gmra.mxu0 %v729
    %v840 = vpop.f32.mrf.mxu0
    %v841 = vadd.f32 %v751, %v840
    %v842 = vpop.f32.mrf.mxu0
    %v843 = vadd.f32 %v751, %v842
    %844 = vmatmul.bf16.gmra.mxu0 %v730
    %v845 = vpop.f32.mrf.mxu0
    %v846 = vadd.f32 %v751, %v845
    %v847 = vpop.f32.mrf.mxu0
    %v848 = vadd.f32 %v751, %v847
    %849 = vdwg.mxu0
    %vm850 = vcmp.gt.f32.partialorder %v811, 0.0
    %vm851 = vcmp.gt.f32.partialorder %v813, 0.0
    %vm852 = vcmp.gt.f32.partialorder %v816, 0.0
    %vm853 = vcmp.gt.f32.partialorder %v818, 0.0
    %vm854 = vcmp.gt.f32.partialorder %v821, 0.0
    %vm855 = vcmp.gt.f32.partialorder %v823, 0.0
    %vm856 = vcmp.gt.f32.partialorder %v826, 0.0
    %vm857 = vcmp.gt.f32.partialorder %v828, 0.0
    %vm858 = vcmp.gt.f32.partialorder %v831, 0.0
    %vm859 = vcmp.gt.f32.partialorder %v833, 0.0
    %vm860 = vcmp.gt.f32.partialorder %v836, 0.0
    %vm861 = vcmp.gt.f32.partialorder %v838, 0.0
    %vm862 = vcmp.gt.f32.partialorder %v841, 0.0
    %vm863 = vcmp.gt.f32.partialorder %v843, 0.0
    %vm864 = vcmp.gt.f32.partialorder %v846, 0.0
    %vm865 = vcmp.gt.f32.partialorder %v848, 0.0
    %v866 = vmul.f32 %v811, 0.01
    %v867 = vmul.f32 %v813, 0.01
    %v868 = vmul.f32 %v816, 0.01
    %v869 = vmul.f32 %v818, 0.01
    %v870 = vmul.f32 %v821, 0.01
    %v871 = vmul.f32 %v823, 0.01
    %v872 = vmul.f32 %v826, 0.01
    %v873 = vmul.f32 %v828, 0.01
    %v874 = vmul.f32 %v831, 0.01
    %v875 = vmul.f32 %v833, 0.01
    %v876 = vmul.f32 %v836, 0.01
    %v877 = vmul.f32 %v838, 0.01
    %v878 = vmul.f32 %v841, 0.01
    %v879 = vmul.f32 %v843, 0.01
    %v880 = vmul.f32 %v846, 0.01
    %v881 = vmul.f32 %v848, 0.01
    %v882 = vsel %vm850, %v811, %v866
    %v883 = vsel %vm851, %v813, %v867
    %v884 = vsel %vm852, %v816, %v868
    %v885 = vsel %vm853, %v818, %v869
    %v886 = vsel %vm854, %v821, %v870
    %v887 = vsel %vm855, %v823, %v871
    %v888 = vsel %vm856, %v826, %v872
    %v889 = vsel %vm857, %v828, %v873
    %v890 = vsel %vm858, %v831, %v874
    %v891 = vsel %vm859, %v833, %v875
    %v892 = vsel %vm860, %v836, %v876
    %v893 = vsel %vm861, %v838, %v877
    %v894 = vsel %vm862, %v841, %v878
    %v895 = vsel %vm863, %v843, %v879
    %v896 = vsel %vm864, %v846, %v880
    %v897 = vsel %vm865, %v848, %v881
    %898 = vst [vmem:[#allocation10] sm:$0xff] %v882
    %899 = vst [vmem:[#allocation10 + $0x8] sm:$0xff] %v883
    %900 = vst [vmem:[#allocation10 + $0x10] sm:$0xff] %v884
    %901 = vst [vmem:[#allocation10 + $0x18] sm:$0xff] %v885
    %902 = vst [vmem:[#allocation10 + $0x20] sm:$0xff] %v886
    %903 = vst [vmem:[#allocation10 + $0x28] sm:$0xff] %v887
    %904 = vst [vmem:[#allocation10 + $0x30] sm:$0xff] %v888
    %905 = vst [vmem:[#allocation10 + $0x38] sm:$0xff] %v889
    %906 = vst [vmem:[#allocation10 + $0x40] sm:$0xff] %v890
    %907 = vst [vmem:[#allocation10 + $0x48] sm:$0xff] %v891
    %908 = vst [vmem:[#allocation10 + $0x50] sm:$0xff] %v892
    %909 = vst [vmem:[#allocation10 + $0x58] sm:$0xff] %v893
    %910 = vst [vmem:[#allocation10 + $0x60] sm:$0xff] %v894
    %911 = vst [vmem:[#allocation10 + $0x68] sm:$0xff] %v895
    %912 = vst [vmem:[#allocation10 + $0x70] sm:$0xff] %v896
    %913 = vst [vmem:[#allocation10 + $0x78] sm:$0xff] %v897
    %v914 = vpack.c.bf16 %v883, %v882
    %v915 = vpack.c.bf16 %v885, %v884
    %v916 = vpack.c.bf16 %v887, %v886
    %v917 = vpack.c.bf16 %v889, %v888
    %v918 = vpack.c.bf16 %v891, %v890
    %v919 = vpack.c.bf16 %v893, %v892
    %v920 = vpack.c.bf16 %v895, %v894
    %v921 = vpack.c.bf16 %v897, %v896
    %s922 = scalar_lea.vmem [#allocation7], 192
    %v923 = vld [vmem:[%s922] sm:$0xf]
    %v924 = vld [vmem:[%s922 + $0x4] sm:$0xf]
    %v925 = vld [vmem:[%s922 + $0x8] sm:$0xf]
    %v926 = vld [vmem:[%s922 + $0xc] sm:$0xf]
    %v927 = vld [vmem:[%s922 + $0x10] sm:$0xf]
    %v928 = vld [vmem:[%s922 + $0x14] sm:$0xf]
    %v929 = vld [vmem:[%s922 + $0x18] sm:$0xf]
    %v930 = vld [vmem:[%s922 + $0x1c] sm:$0xf]
    %v931 = vld [vmem:[%s922 + $0x20] sm:$0xf]
    %v932 = vld [vmem:[%s922 + $0x24] sm:$0xf]
    %v933 = vld [vmem:[%s922 + $0x28] sm:$0xf]
    %v934 = vld [vmem:[%s922 + $0x2c] sm:$0xf]
    %v935 = vld [vmem:[%s922 + $0x30] sm:$0xf]
    %v936 = vld [vmem:[%s922 + $0x34] sm:$0xf]
    %v937 = vld [vmem:[%s922 + $0x38] sm:$0xf]
    %v938 = vld [vmem:[%s922 + $0x3c] sm:$0xf]
    %s939 = scalar_lea.vmem [#allocation8], 3
    %v940 = vld [vmem:[%s939] sm:$0x1]
    %v942 = vperm.slane %v940, 0
    %v960 = vunpack.c.l.b16 %v923
    %v961 = vunpack.c.l.b16 %v924
    %v962 = vunpack.c.l.b16 %v925
    %v963 = vunpack.c.l.b16 %v926
    %v964 = vunpack.c.l.b16 %v927
    %v965 = vunpack.c.l.b16 %v928
    %v966 = vunpack.c.l.b16 %v929
    %v967 = vunpack.c.l.b16 %v930
    %v968 = vunpack.c.l.b16 %v931
    %v969 = vunpack.c.l.b16 %v932
    %v970 = vunpack.c.l.b16 %v933
    %v971 = vunpack.c.l.b16 %v934
    %v972 = vunpack.c.l.b16 %v935
    %v973 = vunpack.c.l.b16 %v936
    %v974 = vunpack.c.l.b16 %v937
    %v975 = vunpack.c.l.b16 %v938
    %v976 = vpack.c.b16 %v961, %v960
    %v977 = vpack.c.b16 %v963, %v962
    %v978 = vpack.c.b16 %v965, %v964
    %v979 = vpack.c.b16 %v967, %v966
    %v980 = vpack.c.b16 %v969, %v968
    %v981 = vpack.c.b16 %v971, %v970
    %v982 = vpack.c.b16 %v973, %v972
    %v983 = vpack.c.b16 %v975, %v974
    %992 = vmatpush.bf16.msra.mxu0 %v983
    %993 = vmatpush.bf16.msra.mxu0 %v982
    %994 = vmatpush.bf16.msra.mxu0 %v981
    %995 = vmatpush.bf16.msra.mxu0 %v980
    %996 = vmatpush.bf16.msra.mxu0 %v979
    %997 = vmatpush.bf16.msra.mxu0 %v978
    %998 = vmatpush.bf16.msra.mxu0 %v977
    %999 = vmatpush.bf16.msra.mxu0 %v976
    %1000 = vmatmul.bf16.gmra.mxu0 %v914
    %v1001 = vpop.f32.mrf.mxu0
    %v1002 = vadd.f32 %v942, %v1001
    %v1003 = vpop.f32.mrf.mxu0
    %v1004 = vadd.f32 %v942, %v1003
    %1005 = vmatmul.bf16.gmra.mxu0 %v915
    %v1006 = vpop.f32.mrf.mxu0
    %v1007 = vadd.f32 %v942, %v1006
    %v1008 = vpop.f32.mrf.mxu0
    %v1009 = vadd.f32 %v942, %v1008
    %1010 = vmatmul.bf16.gmra.mxu0 %v916
    %v1011 = vpop.f32.mrf.mxu0
    %v1012 = vadd.f32 %v942, %v1011
    %v1013 = vpop.f32.mrf.mxu0
    %v1014 = vadd.f32 %v942, %v1013
    %1015 = vmatmul.bf16.gmra.mxu0 %v917
    %v1016 = vpop.f32.mrf.mxu0
    %v1017 = vadd.f32 %v942, %v1016
    %v1018 = vpop.f32.mrf.mxu0
    %v1019 = vadd.f32 %v942, %v1018
    %1020 = vmatmul.bf16.gmra.mxu0 %v918
    %v1021 = vpop.f32.mrf.mxu0
    %v1022 = vadd.f32 %v942, %v1021
    %v1023 = vpop.f32.mrf.mxu0
    %v1024 = vadd.f32 %v942, %v1023
    %1025 = vmatmul.bf16.gmra.mxu0 %v919
    %v1026 = vpop.f32.mrf.mxu0
    %v1027 = vadd.f32 %v942, %v1026
    %v1028 = vpop.f32.mrf.mxu0
    %v1029 = vadd.f32 %v942, %v1028
    %1030 = vmatmul.bf16.gmra.mxu0 %v920
    %v1031 = vpop.f32.mrf.mxu0
    %v1032 = vadd.f32 %v942, %v1031
    %v1033 = vpop.f32.mrf.mxu0
    %v1034 = vadd.f32 %v942, %v1033
    %1035 = vmatmul.bf16.gmra.mxu0 %v921
    %v1036 = vpop.f32.mrf.mxu0
    %v1037 = vadd.f32 %v942, %v1036
    %v1038 = vpop.f32.mrf.mxu0
    %v1039 = vadd.f32 %v942, %v1038
    %1040 = vdwg.mxu0
    %vm1041 = vcmp.gt.f32.partialorder %v1002, 0.0
    %vm1042 = vcmp.gt.f32.partialorder %v1004, 0.0
    %vm1043 = vcmp.gt.f32.partialorder %v1007, 0.0
    %vm1044 = vcmp.gt.f32.partialorder %v1009, 0.0
    %vm1045 = vcmp.gt.f32.partialorder %v1012, 0.0
    %vm1046 = vcmp.gt.f32.partialorder %v1014, 0.0
    %vm1047 = vcmp.gt.f32.partialorder %v1017, 0.0
    %vm1048 = vcmp.gt.f32.partialorder %v1019, 0.0
    %vm1049 = vcmp.gt.f32.partialorder %v1022, 0.0
    %vm1050 = vcmp.gt.f32.partialorder %v1024, 0.0
    %vm1051 = vcmp.gt.f32.partialorder %v1027, 0.0
    %vm1052 = vcmp.gt.f32.partialorder %v1029, 0.0
    %vm1053 = vcmp.gt.f32.partialorder %v1032, 0.0
    %vm1054 = vcmp.gt.f32.partialorder %v1034, 0.0
    %vm1055 = vcmp.gt.f32.partialorder %v1037, 0.0
    %vm1056 = vcmp.gt.f32.partialorder %v1039, 0.0
    %v1057 = vmul.f32 %v1002, 0.01
    %v1058 = vmul.f32 %v1004, 0.01
    %v1059 = vmul.f32 %v1007, 0.01
    %v1060 = vmul.f32 %v1009, 0.01
    %v1061 = vmul.f32 %v1012, 0.01
    %v1062 = vmul.f32 %v1014, 0.01
    %v1063 = vmul.f32 %v1017, 0.01
    %v1064 = vmul.f32 %v1019, 0.01
    %v1065 = vmul.f32 %v1022, 0.01
    %v1066 = vmul.f32 %v1024, 0.01
    %v1067 = vmul.f32 %v1027, 0.01
    %v1068 = vmul.f32 %v1029, 0.01
    %v1069 = vmul.f32 %v1032, 0.01
    %v1070 = vmul.f32 %v1034, 0.01
    %v1071 = vmul.f32 %v1037, 0.01
    %v1072 = vmul.f32 %v1039, 0.01
    %v1073 = vsel %vm1041, %v1002, %v1057
    %v1074 = vsel %vm1042, %v1004, %v1058
    %v1075 = vsel %vm1043, %v1007, %v1059
    %v1076 = vsel %vm1044, %v1009, %v1060
    %v1077 = vsel %vm1045, %v1012, %v1061
    %v1078 = vsel %vm1046, %v1014, %v1062
    %v1079 = vsel %vm1047, %v1017, %v1063
    %v1080 = vsel %vm1048, %v1019, %v1064
    %v1081 = vsel %vm1049, %v1022, %v1065
    %v1082 = vsel %vm1050, %v1024, %v1066
    %v1083 = vsel %vm1051, %v1027, %v1067
    %v1084 = vsel %vm1052, %v1029, %v1068
    %v1085 = vsel %vm1053, %v1032, %v1069
    %v1086 = vsel %vm1054, %v1034, %v1070
    %v1087 = vsel %vm1055, %v1037, %v1071
    %v1088 = vsel %vm1056, %v1039, %v1072
    %v1089 = vpack.c.bf16 %v1074, %v1073
    %v1090 = vpack.c.bf16 %v1076, %v1075
    %v1091 = vpack.c.bf16 %v1078, %v1077
    %v1092 = vpack.c.bf16 %v1080, %v1079
    %v1093 = vpack.c.bf16 %v1082, %v1081
    %v1094 = vpack.c.bf16 %v1084, %v1083
    %v1095 = vpack.c.bf16 %v1086, %v1085
    %v1096 = vpack.c.bf16 %v1088, %v1087
    %s1097 = scalar_lea.vmem [#allocation7], 256
    %v1098 = vld [vmem:[%s1097] sm:$0xf]
    %v1099 = vld [vmem:[%s1097 + $0x4] sm:$0xf]
    %v1100 = vld [vmem:[%s1097 + $0x8] sm:$0xf]
    %v1101 = vld [vmem:[%s1097 + $0xc] sm:$0xf]
    %v1102 = vld [vmem:[%s1097 + $0x10] sm:$0xf]
    %v1103 = vld [vmem:[%s1097 + $0x14] sm:$0xf]
    %v1104 = vld [vmem:[%s1097 + $0x18] sm:$0xf]
    %v1105 = vld [vmem:[%s1097 + $0x1c] sm:$0xf]
    %v1106 = vld [vmem:[%s1097 + $0x20] sm:$0xf]
    %v1107 = vld [vmem:[%s1097 + $0x24] sm:$0xf]
    %v1108 = vld [vmem:[%s1097 + $0x28] sm:$0xf]
    %v1109 = vld [vmem:[%s1097 + $0x2c] sm:$0xf]
    %v1110 = vld [vmem:[%s1097 + $0x30] sm:$0xf]
    %v1111 = vld [vmem:[%s1097 + $0x34] sm:$0xf]
    %v1112 = vld [vmem:[%s1097 + $0x38] sm:$0xf]
    %v1113 = vld [vmem:[%s1097 + $0x3c] sm:$0xf]
    %s1114 = scalar_lea.vmem [#allocation8], 4
    %v1115 = vld [vmem:[%s1114] sm:$0x1]
    %v1117 = vperm.slane %v1115, 0
    %v1135 = vunpack.c.l.b16 %v1098
    %v1136 = vunpack.c.l.b16 %v1099
    %v1137 = vunpack.c.l.b16 %v1100
    %v1138 = vunpack.c.l.b16 %v1101
    %v1139 = vunpack.c.l.b16 %v1102
    %v1140 = vunpack.c.l.b16 %v1103
    %v1141 = vunpack.c.l.b16 %v1104
    %v1142 = vunpack.c.l.b16 %v1105
    %v1143 = vunpack.c.l.b16 %v1106
    %v1144 = vunpack.c.l.b16 %v1107
    %v1145 = vunpack.c.l.b16 %v1108
    %v1146 = vunpack.c.l.b16 %v1109
    %v1147 = vunpack.c.l.b16 %v1110
    %v1148 = vunpack.c.l.b16 %v1111
    %v1149 = vunpack.c.l.b16 %v1112
    %v1150 = vunpack.c.l.b16 %v1113
    %v1151 = vpack.c.b16 %v1136, %v1135
    %v1152 = vpack.c.b16 %v1138, %v1137
    %v1153 = vpack.c.b16 %v1140, %v1139
    %v1154 = vpack.c.b16 %v1142, %v1141
    %v1155 = vpack.c.b16 %v1144, %v1143
    %v1156 = vpack.c.b16 %v1146, %v1145
    %v1157 = vpack.c.b16 %v1148, %v1147
    %v1158 = vpack.c.b16 %v1150, %v1149
    %1167 = vmatpush.bf16.msra.mxu0 %v1158
    %1168 = vmatpush.bf16.msra.mxu0 %v1157
    %1169 = vmatpush.bf16.msra.mxu0 %v1156
    %1170 = vmatpush.bf16.msra.mxu0 %v1155
    %1171 = vmatpush.bf16.msra.mxu0 %v1154
    %1172 = vmatpush.bf16.msra.mxu0 %v1153
    %1173 = vmatpush.bf16.msra.mxu0 %v1152
    %1174 = vmatpush.bf16.msra.mxu0 %v1151
    %1175 = vmatmul.bf16.gmra.mxu0 %v1089
    %v1176 = vpop.f32.mrf.mxu0
    %v1177 = vadd.f32 %v1117, %v1176
    %v1178 = vpop.f32.mrf.mxu0
    %v1179 = vadd.f32 %v1117, %v1178
    %1180 = vmatmul.bf16.gmra.mxu0 %v1090
    %v1181 = vpop.f32.mrf.mxu0
    %v1182 = vadd.f32 %v1117, %v1181
    %v1183 = vpop.f32.mrf.mxu0
    %v1184 = vadd.f32 %v1117, %v1183
    %1185 = vmatmul.bf16.gmra.mxu0 %v1091
    %v1186 = vpop.f32.mrf.mxu0
    %v1187 = vadd.f32 %v1117, %v1186
    %v1188 = vpop.f32.mrf.mxu0
    %v1189 = vadd.f32 %v1117, %v1188
    %1190 = vmatmul.bf16.gmra.mxu0 %v1092
    %v1191 = vpop.f32.mrf.mxu0
    %v1192 = vadd.f32 %v1117, %v1191
    %v1193 = vpop.f32.mrf.mxu0
    %v1194 = vadd.f32 %v1117, %v1193
    %1195 = vmatmul.bf16.gmra.mxu0 %v1093
    %v1196 = vpop.f32.mrf.mxu0
    %v1197 = vadd.f32 %v1117, %v1196
    %v1198 = vpop.f32.mrf.mxu0
    %v1199 = vadd.f32 %v1117, %v1198
    %1200 = vmatmul.bf16.gmra.mxu0 %v1094
    %v1201 = vpop.f32.mrf.mxu0
    %v1202 = vadd.f32 %v1117, %v1201
    %v1203 = vpop.f32.mrf.mxu0
    %v1204 = vadd.f32 %v1117, %v1203
    %1205 = vmatmul.bf16.gmra.mxu0 %v1095
    %v1206 = vpop.f32.mrf.mxu0
    %v1207 = vadd.f32 %v1117, %v1206
    %v1208 = vpop.f32.mrf.mxu0
    %v1209 = vadd.f32 %v1117, %v1208
    %1210 = vmatmul.bf16.gmra.mxu0 %v1096
    %v1211 = vpop.f32.mrf.mxu0
    %v1212 = vadd.f32 %v1117, %v1211
    %v1213 = vpop.f32.mrf.mxu0
    %v1214 = vadd.f32 %v1117, %v1213
    %1215 = vdwg.mxu0
    %vm1216 = vcmp.gt.f32.partialorder %v1177, 0.0
    %vm1217 = vcmp.gt.f32.partialorder %v1179, 0.0
    %vm1218 = vcmp.gt.f32.partialorder %v1182, 0.0
    %vm1219 = vcmp.gt.f32.partialorder %v1184, 0.0
    %vm1220 = vcmp.gt.f32.partialorder %v1187, 0.0
    %vm1221 = vcmp.gt.f32.partialorder %v1189, 0.0
    %vm1222 = vcmp.gt.f32.partialorder %v1192, 0.0
    %vm1223 = vcmp.gt.f32.partialorder %v1194, 0.0
    %vm1224 = vcmp.gt.f32.partialorder %v1197, 0.0
    %vm1225 = vcmp.gt.f32.partialorder %v1199, 0.0
    %vm1226 = vcmp.gt.f32.partialorder %v1202, 0.0
    %vm1227 = vcmp.gt.f32.partialorder %v1204, 0.0
    %vm1228 = vcmp.gt.f32.partialorder %v1207, 0.0
    %vm1229 = vcmp.gt.f32.partialorder %v1209, 0.0
    %vm1230 = vcmp.gt.f32.partialorder %v1212, 0.0
    %vm1231 = vcmp.gt.f32.partialorder %v1214, 0.0
    %v1232 = vmul.f32 %v1177, 0.01
    %v1233 = vmul.f32 %v1179, 0.01
    %v1234 = vmul.f32 %v1182, 0.01
    %v1235 = vmul.f32 %v1184, 0.01
    %v1236 = vmul.f32 %v1187, 0.01
    %v1237 = vmul.f32 %v1189, 0.01
    %v1238 = vmul.f32 %v1192, 0.01
    %v1239 = vmul.f32 %v1194, 0.01
    %v1240 = vmul.f32 %v1197, 0.01
    %v1241 = vmul.f32 %v1199, 0.01
    %v1242 = vmul.f32 %v1202, 0.01
    %v1243 = vmul.f32 %v1204, 0.01
    %v1244 = vmul.f32 %v1207, 0.01
    %v1245 = vmul.f32 %v1209, 0.01
    %v1246 = vmul.f32 %v1212, 0.01
    %v1247 = vmul.f32 %v1214, 0.01
    %v1248 = vsel %vm1216, %v1177, %v1232
    %v1249 = vsel %vm1217, %v1179, %v1233
    %v1250 = vsel %vm1218, %v1182, %v1234
    %v1251 = vsel %vm1219, %v1184, %v1235
    %v1252 = vsel %vm1220, %v1187, %v1236
    %v1253 = vsel %vm1221, %v1189, %v1237
    %v1254 = vsel %vm1222, %v1192, %v1238
    %v1255 = vsel %vm1223, %v1194, %v1239
    %v1256 = vsel %vm1224, %v1197, %v1240
    %v1257 = vsel %vm1225, %v1199, %v1241
    %v1258 = vsel %vm1226, %v1202, %v1242
    %v1259 = vsel %vm1227, %v1204, %v1243
    %v1260 = vsel %vm1228, %v1207, %v1244
    %v1261 = vsel %vm1229, %v1209, %v1245
    %v1262 = vsel %vm1230, %v1212, %v1246
    %v1263 = vsel %vm1231, %v1214, %v1247
    %v1264 = vpack.c.bf16 %v1249, %v1248
    %v1265 = vpack.c.bf16 %v1251, %v1250
    %v1266 = vpack.c.bf16 %v1253, %v1252
    %v1267 = vpack.c.bf16 %v1255, %v1254
    %v1268 = vpack.c.bf16 %v1257, %v1256
    %v1269 = vpack.c.bf16 %v1259, %v1258
    %v1270 = vpack.c.bf16 %v1261, %v1260
    %v1271 = vpack.c.bf16 %v1263, %v1262
    %s1272 = scalar_lea.vmem [#allocation7], 320
    %v1273 = vld [vmem:[%s1272] sm:$0xf]
    %v1274 = vld [vmem:[%s1272 + $0x4] sm:$0xf]
    %v1275 = vld [vmem:[%s1272 + $0x8] sm:$0xf]
    %v1276 = vld [vmem:[%s1272 + $0xc] sm:$0xf]
    %v1277 = vld [vmem:[%s1272 + $0x10] sm:$0xf]
    %v1278 = vld [vmem:[%s1272 + $0x14] sm:$0xf]
    %v1279 = vld [vmem:[%s1272 + $0x18] sm:$0xf]
    %v1280 = vld [vmem:[%s1272 + $0x1c] sm:$0xf]
    %v1281 = vld [vmem:[%s1272 + $0x20] sm:$0xf]
    %v1282 = vld [vmem:[%s1272 + $0x24] sm:$0xf]
    %v1283 = vld [vmem:[%s1272 + $0x28] sm:$0xf]
    %v1284 = vld [vmem:[%s1272 + $0x2c] sm:$0xf]
    %v1285 = vld [vmem:[%s1272 + $0x30] sm:$0xf]
    %v1286 = vld [vmem:[%s1272 + $0x34] sm:$0xf]
    %v1287 = vld [vmem:[%s1272 + $0x38] sm:$0xf]
    %v1288 = vld [vmem:[%s1272 + $0x3c] sm:$0xf]
    %s1289 = scalar_lea.vmem [#allocation8], 5
    %v1290 = vld [vmem:[%s1289] sm:$0x1]
    %v1292 = vperm.slane %v1290, 0
    %v1310 = vunpack.c.l.b16 %v1273
    %v1311 = vunpack.c.l.b16 %v1274
    %v1312 = vunpack.c.l.b16 %v1275
    %v1313 = vunpack.c.l.b16 %v1276
    %v1314 = vunpack.c.l.b16 %v1277
    %v1315 = vunpack.c.l.b16 %v1278
    %v1316 = vunpack.c.l.b16 %v1279
    %v1317 = vunpack.c.l.b16 %v1280
    %v1318 = vunpack.c.l.b16 %v1281
    %v1319 = vunpack.c.l.b16 %v1282
    %v1320 = vunpack.c.l.b16 %v1283
    %v1321 = vunpack.c.l.b16 %v1284
    %v1322 = vunpack.c.l.b16 %v1285
    %v1323 = vunpack.c.l.b16 %v1286
    %v1324 = vunpack.c.l.b16 %v1287
    %v1325 = vunpack.c.l.b16 %v1288
    %v1326 = vpack.c.b16 %v1311, %v1310
    %v1327 = vpack.c.b16 %v1313, %v1312
    %v1328 = vpack.c.b16 %v1315, %v1314
    %v1329 = vpack.c.b16 %v1317, %v1316
    %v1330 = vpack.c.b16 %v1319, %v1318
    %v1331 = vpack.c.b16 %v1321, %v1320
    %v1332 = vpack.c.b16 %v1323, %v1322
    %v1333 = vpack.c.b16 %v1325, %v1324
    %1342 = vmatpush.bf16.msra.mxu0 %v1333
    %1343 = vmatpush.bf16.msra.mxu0 %v1332
    %1344 = vmatpush.bf16.msra.mxu0 %v1331
    %1345 = vmatpush.bf16.msra.mxu0 %v1330
    %1346 = vmatpush.bf16.msra.mxu0 %v1329
    %1347 = vmatpush.bf16.msra.mxu0 %v1328
    %1348 = vmatpush.bf16.msra.mxu0 %v1327
    %1349 = vmatpush.bf16.msra.mxu0 %v1326
    %1350 = vmatmul.bf16.gmra.mxu0 %v1264
    %v1351 = vpop.f32.mrf.mxu0
    %v1352 = vadd.f32 %v1292, %v1351
    %v1353 = vpop.f32.mrf.mxu0
    %v1354 = vadd.f32 %v1292, %v1353
    %1355 = vmatmul.bf16.gmra.mxu0 %v1265
    %v1356 = vpop.f32.mrf.mxu0
    %v1357 = vadd.f32 %v1292, %v1356
    %v1358 = vpop.f32.mrf.mxu0
    %v1359 = vadd.f32 %v1292, %v1358
    %1360 = vmatmul.bf16.gmra.mxu0 %v1266
    %v1361 = vpop.f32.mrf.mxu0
    %v1362 = vadd.f32 %v1292, %v1361
    %v1363 = vpop.f32.mrf.mxu0
    %v1364 = vadd.f32 %v1292, %v1363
    %1365 = vmatmul.bf16.gmra.mxu0 %v1267
    %v1366 = vpop.f32.mrf.mxu0
    %v1367 = vadd.f32 %v1292, %v1366
    %v1368 = vpop.f32.mrf.mxu0
    %v1369 = vadd.f32 %v1292, %v1368
    %1370 = vmatmul.bf16.gmra.mxu0 %v1268
    %v1371 = vpop.f32.mrf.mxu0
    %v1372 = vadd.f32 %v1292, %v1371
    %v1373 = vpop.f32.mrf.mxu0
    %v1374 = vadd.f32 %v1292, %v1373
    %1375 = vmatmul.bf16.gmra.mxu0 %v1269
    %v1376 = vpop.f32.mrf.mxu0
    %v1377 = vadd.f32 %v1292, %v1376
    %v1378 = vpop.f32.mrf.mxu0
    %v1379 = vadd.f32 %v1292, %v1378
    %1380 = vmatmul.bf16.gmra.mxu0 %v1270
    %v1381 = vpop.f32.mrf.mxu0
    %v1382 = vadd.f32 %v1292, %v1381
    %v1383 = vpop.f32.mrf.mxu0
    %v1384 = vadd.f32 %v1292, %v1383
    %1385 = vmatmul.bf16.gmra.mxu0 %v1271
    %v1386 = vpop.f32.mrf.mxu0
    %v1387 = vadd.f32 %v1292, %v1386
    %v1388 = vpop.f32.mrf.mxu0
    %v1389 = vadd.f32 %v1292, %v1388
    %1390 = vdwg.mxu0
    %1391 = vst [vmem:[#allocation11] sm:$0xff] %v1352
    %1392 = vst [vmem:[#allocation11 + $0x8] sm:$0xff] %v1354
    %1393 = vst [vmem:[#allocation11 + $0x10] sm:$0xff] %v1357
    %1394 = vst [vmem:[#allocation11 + $0x18] sm:$0xff] %v1359
    %1395 = vst [vmem:[#allocation11 + $0x20] sm:$0xff] %v1362
    %1396 = vst [vmem:[#allocation11 + $0x28] sm:$0xff] %v1364
    %1397 = vst [vmem:[#allocation11 + $0x30] sm:$0xff] %v1367
    %1398 = vst [vmem:[#allocation11 + $0x38] sm:$0xff] %v1369
    %1399 = vst [vmem:[#allocation11 + $0x40] sm:$0xff] %v1372
    %1400 = vst [vmem:[#allocation11 + $0x48] sm:$0xff] %v1374
    %1401 = vst [vmem:[#allocation11 + $0x50] sm:$0xff] %v1377
    %1402 = vst [vmem:[#allocation11 + $0x58] sm:$0xff] %v1379
    %1403 = vst [vmem:[#allocation11 + $0x60] sm:$0xff] %v1382
    %1404 = vst [vmem:[#allocation11 + $0x68] sm:$0xff] %v1384
    %1405 = vst [vmem:[#allocation11 + $0x70] sm:$0xff] %v1387
    %1406 = vst [vmem:[#allocation11 + $0x78] sm:$0xff] %v1389
    // Predicated region
    $region34: #{tpu_custom_call.1} parent=1 // pred_check
      _
    $region35: #{tpu_custom_call.1} parent=1 // pred_check_branch
      %1408 = sbr.rel (0) target = $region37
    $region36: #{tpu_custom_call.1} parent=1 // pred_region
      %1410 = vsyncadd [#allocation4], 0
      %s1411 = sshll.u32 [#allocation10], 4
      %s1412 = int_to_ptr.vmem [resolvable:$true] %s1411
      %s1413 = sshll.u32 %s4, 4
      %s1414 = int_to_ptr.hbm [resolvable:$true] %s1413
      %1419 = dma.vmem_to_hbm [thread:$0]  %s1412, 2048, %s1414, [#allocation4], 128, 128, 8
    $region37: #{tpu_custom_call.1} parent=1 // pred_fallthru
      _
    // Predicated region
    $region38: #{tpu_custom_call.1} parent=1 // pred_check
      _
    $region39: #{tpu_custom_call.1} parent=1 // pred_check_branch
      %1421 = sbr.rel (0) target = $region41
    $region40: #{tpu_custom_call.1} parent=1 // pred_region
      %1423 = vsyncadd [#allocation12], 0
      %s1424 = sshll.u32 [#allocation11], 4
      %s1425 = int_to_ptr.vmem [resolvable:$true] %s1424
      %s1426 = sshll.u32 %s5, 4
      %s1427 = int_to_ptr.hbm [resolvable:$true] %s1426
      %1432 = dma.vmem_to_hbm [thread:$0]  %s1425, 2048, %s1427, [#allocation12], 128, 128, 8
    $region41: #{tpu_custom_call.1} parent=1 // pred_fallthru
      _
    // Predicated region
    $region42: #{tpu_custom_call.1} parent=1 // pred_check
      _
    $region43: #{tpu_custom_call.1} parent=1 // pred_check_branch
      %1434 = sbr.rel (0) target = $region45
    $region44: #{tpu_custom_call.1} parent=1 // pred_region
      %1436 = dma.done [#allocation4], 2048
    $region45: #{tpu_custom_call.1} parent=1 // pred_fallthru
      _
    // Predicated region
    $region46: #{tpu_custom_call.1} parent=1 // pred_check
      _
    $region47: #{tpu_custom_call.1} parent=1 // pred_check_branch
      %1438 = sbr.rel (0) target = $region49
    $region48: #{tpu_custom_call.1} parent=1 // pred_region
      %1440 = dma.done [#allocation12], 2048
    $region49: #{tpu_custom_call.1} parent=1 // pred_fallthru
      _
    %1441 = vsyncpa [#allocation3], 1
    %1442 = vsyncpa [#allocation6], 1
    %1443 = vsyncpa [#allocation9], 1
    %1444 = vsyncpa [#allocation4], 1
    %1445 = vsyncpa [#allocation12], 1

</llo_original>
